<compile_context>
chip_gen: v7x
topology: tpu7x:2x2x1
jax: 0.10.0
libtpu: 0.0.40
codegen_flags: <defaults>
</compile_context>

<pallas_src>
import numpy as np
import jax
import jax.numpy as jnp
from jax.experimental import pallas as pl
from jax.experimental.pallas import tpu as pltpu


# ----------------------------------------------------------------------------
# Host-side operator-matrix builders (tiny, dense, computed once per call)
# ----------------------------------------------------------------------------
def _pool3x3_matrix(h, w):
    """(h*w, h*w) matrix P with vec(avg_pool2d(x,3,1,1)) = P @ vec(x).

    Zero padding + count_include_pad=True -> border rows simply have fewer
    1/9 entries (matches F.avg_pool2d defaults)."""
    hw = h * w
    ys, xs = np.meshgrid(np.arange(h), np.arange(w), indexing="ij")
    oy = ys.reshape(-1)
    ox = xs.reshape(-1)
    rows = np.arange(hw)
    p = np.zeros((hw, hw), np.float32)
    for dy in (-1, 0, 1):
        for dx in (-1, 0, 1):
            iy = oy + dy
            ix = ox + dx
            valid = (iy >= 0) & (iy < h) & (ix >= 0) & (ix < w)
            p[rows[valid], (iy * w + ix)[valid]] += 1.0 / 9.0
    return p


def _resize_matrix_1d(out_sz, in_sz):
    """(out_sz, in_sz) 1-D bilinear matrix matching F.interpolate(
    mode='bilinear', align_corners=False) source-index convention."""
    r = np.zeros((out_sz, in_sz), np.float32)
    scale = in_sz / out_sz
    for i in range(out_sz):
        src = max((i + 0.5) * scale - 0.5, 0.0)
        i0 = min(int(np.floor(src)), in_sz - 1)
        i1 = min(i0 + 1, in_sz - 1)
        lam = src - i0
        r[i, i0] += 1.0 - lam
        r[i, i1] += lam
    return r


def _pick_block_batch(b):
    """Largest Bt in {8,4,2,1} dividing b that still leaves >= 2 grid steps."""
    if b <= 1:
        return 1
    for bt in (8, 4, 2):
        if b % bt == 0 and b // bt >= 2:
            return bt
    return 1


# ----------------------------------------------------------------------------
# Fused Pallas kernel: pool + resizes + 1x1 CoordConv, Bt batch elems per step
# ----------------------------------------------------------------------------
def _make_descriptor_kernel(n_feats, bt, op_offs, op_rows, conv_first,
                            compute_dtype):
    def kernel(*refs):
        feat_refs = refs[:n_feats]                    # (Bt, Ci, hw_i) each
        ops_ref = refs[n_feats]                       # (sum hw_i, HW) stacked
        w_refs = refs[n_feats + 1:2 * n_feats + 1]    # (C_blk, Ci) each
        cb_ref = refs[2 * n_feats + 1]                # (C_blk, HW) coord+bias
        o_ref = refs[2 * n_feats + 2]                 # (Bt, C_blk, HW)

        # Init: coord-channel + bias epilogue.  The output block doubles as
        # the VMEM accumulator, so no (C_out, HW) f32 accumulator is held live
        # in vregs across the matmuls.
        for bb in range(bt):
            o_ref[bb] = cb_ref[...]

        for fi in range(n_feats):
            op = ops_ref[pl.ds(op_offs[fi], op_rows[fi]), :]   # (hw_i, HW)
            w = w_refs[fi][...]                                 # (C_blk, Ci)
            for bb in range(bt):
                f = feat_refs[fi][bb]                           # (Ci, hw_i)
                if conv_first[fi]:
                    # (W_i @ F_i) @ Op_i : tiny (C_blk, hw_i) intermediate
                    a = jnp.dot(w, f, preferred_element_type=jnp.float32)
                    contrib = jnp.dot(a.astype(compute_dtype), op,
                                      preferred_element_type=jnp.float32)
                else:
                    # W_i @ (F_i @ Op_i) : cheaper when Ci < C_out (feature 0)
                    x = jnp.dot(f, op, preferred_element_type=jnp.float32)
                    contrib = jnp.dot(w, x.astype(compute_dtype),
                                      preferred_element_type=jnp.float32)
                o_ref[bb] = o_ref[bb] + contrib
    return kernel


def descriptor_forward(features, weight, bias, *, compute_dtype=jnp.bfloat16):
    """Fused CFA Descriptor forward.

    features: list of NCHW f32 arrays (first is pooled, rest bilinear-resized).
    weight:   (C_out, sum(Ci) + 2) 1x1 CoordConv weight (xx, yy columns last).
    bias:     (C_out,)
    Returns   (B, C_out, H, W) f32 (NCHW, like the PyTorch module).
    """
    f0 = features[0]
    b = int(f0.shape[0])
    h, w = int(f0.shape[2]), int(f0.shape[3])
    hw = h * w
    n = len(features)
    c_feats = [int(f.shape[1]) for f in features]
    hw_feats = [int(f.shape[2]) * int(f.shape[3]) for f in features]
    c_sum = sum(c_feats)
    c_out = int(weight.shape[0])
    assert int(weight.shape[1]) == c_sum + 2

    # --- operands: contiguous (free) reshapes + bf16 casts, no transposes ----
    feats_flat = [f.reshape(b, c, hw_i).astype(compute_dtype)
                  for f, c, hw_i in zip(features, c_feats, hw_feats)]

    # --- precomputed spatial operators, stacked into ONE operand -------------
    op_list = [_pool3x3_matrix(h, w).T]                        # (HW, HW)
    for f in features[1:]:
        fh, fw = int(f.shape[2]), int(f.shape[3])
        op_list.append(np.kron(_resize_matrix_1d(h, fh),
                               _resize_matrix_1d(w, fw)).T)    # (hw_i, HW)
    align = 16 if compute_dtype == jnp.bfloat16 else 8         # sublane tile
    op_offs, cur = [], 0
    for hw_i in hw_feats:
        op_offs.append(cur)
        cur += ((hw_i + align - 1) // align) * align
    ops_np = np.zeros((cur, hw), np.float32)
    for off, op in zip(op_offs, op_list):
        ops_np[off:off + op.shape[0], :] = op
    ops_cat = jnp.asarray(ops_np, dtype=compute_dtype)         # (sum hw_i, HW)

    # --- 1x1 CoordConv weight: per-feature channel blocks + xx/yy columns ----
    w_blocks, off = [], 0
    for c in c_feats:
        w_blocks.append(weight[:, off:off + c].astype(compute_dtype))
        off += c
    w_xx = weight[:, off]        # weight column for the xx coordinate channel
    w_yy = weight[:, off + 1]    # weight column for the yy coordinate channel

    # --- coordinate + bias epilogue term (C_out, HW), kept in f32 ------------
    # AddCoords: xx varies along H (normalized by H-1), yy along W (by W-1),
    # both mapped to [-1, 1]; concat order is [patch, xx, yy].
    # max(.,1) guards H==1/W==1 (PyTorch would divide by zero there).
    xx = (jnp.arange(h, dtype=jnp.float32) / max(h - 1, 1)) * 2.0 - 1.0
    yy = (jnp.arange(w, dtype=jnp.float32) / max(w - 1, 1)) * 2.0 - 1.0
    xx_flat = jnp.broadcast_to(xx[:, None], (h, w)).reshape(hw)
    yy_flat = jnp.broadcast_to(yy[None, :], (h, w)).reshape(hw)
    cb = (w_xx[:, None] * xx_flat[None, :]
          + w_yy[:, None] * yy_flat[None, :]
          + bias[:, None]).astype(jnp.float32)

    # --- per-feature matmul order: minimize MACs / intermediate size ---------
    conv_first = []
    for ci, hw_i in zip(c_feats, hw_feats):
        cost_spatial_first = ci * hw_i * hw + c_out * ci * hw
        cost_conv_first = c_out * ci * hw_i + c_out * hw_i * hw
        conv_first.append(cost_conv_first < cost_spatial_first)

    # --- grid: batch blocking; split C_out when B alone leaves < 2 steps -----
    bt = _pick_block_batch(b)
    nb = b // bt
    nc = 2 if (nb < 2 and c_out % 16 == 0) else 1
    c_blk = c_out // nc

    in_specs = (
        [pl.BlockSpec((bt, c_feats[k], hw_feats[k]), lambda i, j: (i, 0, 0))
         for k in range(n)]
        + [pl.BlockSpec((int(ops_cat.shape[0]), hw), lambda i, j: (0, 0))]
        + [pl.BlockSpec((c_blk, c_feats[k]), lambda i, j: (j, 0))
           for k in range(n)]
        + [pl.BlockSpec((c_blk, hw), lambda i, j: (j, 0))]
    )
    out_spec = pl.BlockSpec((bt, c_blk, hw), lambda i, j: (i, j, 0))

    # advisory cost hint so XLA can schedule the surrounding graph around this
    macs = 0
    for ci, hw_i, cf in zip(c_feats, hw_feats, conv_first):
        macs += (c_out * ci * hw_i + c_out * hw_i * hw) if cf \
            else (ci * hw_i * hw + c_out * ci * hw)
    itemsize = jnp.dtype(compute_dtype).itemsize
    bytes_accessed = (sum(b * c * hw_i * itemsize
                          for c, hw_i in zip(c_feats, hw_feats))
                      + int(ops_cat.shape[0]) * hw * itemsize
                      + c_out * c_sum * itemsize
                      + c_out * hw * 4
                      + b * c_out * hw * 4)
    cost = pl.CostEstimate(flops=2 * b * macs, transcendentals=0,
                           bytes_accessed=int(bytes_accessed))

    out_flat = pl.pallas_call(
        _make_descriptor_kernel(n, bt, op_offs, hw_feats, conv_first,
                                compute_dtype),
        out_shape=jax.ShapeDtypeStruct((b, c_out, hw), jnp.float32),
        grid=(nb, nc),
        in_specs=in_specs,
        out_specs=out_spec,
        compiler_params=pltpu.CompilerParams(
            dimension_semantics=("parallel", "parallel")),
        cost_estimate=cost,
    )(*feats_flat, ops_cat, *w_blocks, cb)

    return out_flat.reshape(b, c_out, h, w)


# ----------------------------------------------------------------------------
# Pure-JAX reference (independent f32 formulation) for the sanity check
# ----------------------------------------------------------------------------
def _bilinear_resize_ref(x, out_size):
    _, _, h, w = x.shape

    def src_index(out_sz, in_sz):
        scale = in_sz / out_sz
        i = jnp.arange(out_sz, dtype=jnp.float32)
        src = jnp.maximum((i + 0.5) * scale - 0.5, 0.0)
        i0 = jnp.minimum(jnp.floor(src).astype(jnp.int32), in_sz - 1)
        i1 = jnp.minimum(i0 + 1, in_sz - 1)
        lam = src - i0.astype(jnp.float32)
        return i0, i1, lam

    h0, h1, lh = src_index(out_size, h)
    w0, w1, lw = src_index(out_size, w)
    lh = lh[None, None, :, None]
    lw = lw[None, None, None, :]
    rows = x[:, :, h0, :] * (1.0 - lh) + x[:, :, h1, :] * lh
    return rows[:, :, :, w0] * (1.0 - lw) + rows[:, :, :, w1] * lw


def _add_coords_ref(x):
    b, _, h, w = x.shape
    xx = (jnp.arange(h, dtype=jnp.float32) / (h - 1)) * 2.0 - 1.0
    yy = (jnp.arange(w, dtype=jnp.float32) / (w - 1)) * 2.0 - 1.0
    xx_ch = jnp.broadcast_to(xx[None, None, :, None], (b, 1, h, w))
    yy_ch = jnp.broadcast_to(yy[None, None, None, :], (b, 1, h, w))
    return jnp.concatenate([x, xx_ch, yy_ch], axis=1)


def _ref_forward(features, weight, bias):
    def pool(x):
        xp = jnp.pad(x, ((0, 0), (0, 0), (1, 1), (1, 1)))
        acc = sum(xp[:, :, dy:dy + x.shape[2], dx:dx + x.shape[3]]
                  for dy in range(3) for dx in range(3))
        return acc / 9.0

    patch = pool(features[0])
    for feat in features[1:]:
        patch = jnp.concatenate(
            [patch, _bilinear_resize_ref(feat, patch.shape[2])], axis=1)
    coords = _add_coords_ref(patch)
    out = jnp.einsum("bchw,nc->bnhw", coords, weight,
                     precision=jax.lax.Precision.HIGHEST)
    return out + bias[None, :, None, None]


if __name__ == "__main__":
    key = jax.random.PRNGKey(0)
    k1, k2, k3, kw, kb = jax.random.split(key, 5)

    B = 2
    # resnet18-like pyramid: channel sum 64 + 128 + 256 = 448 = backbone dim
    f0 = jax.random.normal(k1, (B, 64, 16, 16), jnp.float32)
    f1 = jax.random.normal(k2, (B, 128, 8, 8), jnp.float32)
    f2 = jax.random.normal(k3, (B, 256, 4, 4), jnp.float32)

    gamma_d = 4
    dim = 448                      # backbone_dims["resnet18"]
    c_out = dim // gamma_d         # 112
    c_in = dim + 2                 # CoordConv adds xx / yy channels -> 450

    # Deterministic synthetic parameters for the 1x1 conv inside CoordConv2d
    weight = jax.random.normal(kw, (c_out, c_in), jnp.float32) * 0.05
    bias = jax.random.normal(kb, (c_out,), jnp.float32) * 0.01

    out = jax.block_until_ready(descriptor_forward([f0, f1, f2], weight, bias))
    assert out.shape == (B, c_out, 16, 16), out.shape
    assert bool(jnp.all(jnp.isfinite(out)))

    ref = jax.block_until_ready(_ref_forward([f0, f1, f2], weight, bias))
    scale = max(float(jnp.max(jnp.abs(ref))), 1.0)
    err = float(jnp.max(jnp.abs(out - ref)))
    # Tolerance scaled to output magnitude: operands are bf16 (f32 accumulate),
    # so the expected error is ~1e-2 absolute at |ref| ~ 3.
    assert err < 2e-2 * scale, f"max abs err {err} (scale {scale})"

    # Also exercise the B == 1 path (grid splits C_out into 2 parallel tiles
    # so both v7x TensorCores are used even for single-image inference).
    out1 = jax.block_until_ready(
        descriptor_forward([f0[:1], f1[:1], f2[:1]], weight, bias))
    err1 = float(jnp.max(jnp.abs(out1 - ref[:1])))
    assert out1.shape == (1, c_out, 16, 16)
    assert err1 < 2e-2 * scale, f"B=1 max abs err {err1} (scale {scale})"

    print("KERNEL_OK")
</pallas_src>

<mosaic_0001>
module attributes {stable_mosaic.version = 11 : i64} {
  func.func @kernel(%arg0: i32, %arg1: i32, %arg2: memref<1x64x256xbf16, #tpu.memory_space<vmem>>, %arg3: memref<1x128x64xbf16, #tpu.memory_space<vmem>>, %arg4: memref<1x256x16xbf16, #tpu.memory_space<vmem>>, %arg5: memref<336x256xbf16, #tpu.memory_space<vmem>>, %arg6: memref<112x64xbf16, #tpu.memory_space<vmem>>, %arg7: memref<112x128xbf16, #tpu.memory_space<vmem>>, %arg8: memref<112x256xbf16, #tpu.memory_space<vmem>>, %arg9: memref<112x256xf32, #tpu.memory_space<vmem>>, %arg10: memref<1x112x256xf32, #tpu.memory_space<vmem>>) attributes {dimension_semantics = [#tpu.dimension_semantics<parallel>, #tpu.dimension_semantics<parallel>], iteration_bounds = array<i64: 2, 1>, scalar_prefetch = 0 : i64, scratch_operands = 0 : i64, tpu.core_type = #tpu.core_type<tc>, window_params = [{transform_indices = @transform_0, window_bounds = array<i64: 1, 64, 256>}, {transform_indices = @transform_1, window_bounds = array<i64: 1, 128, 64>}, {transform_indices = @transform_2, window_bounds = array<i64: 1, 256, 16>}, {pipeline_mode = #tpu.pipeline_mode<synchronous>, transform_indices = @transform_3, window_bounds = array<i64: 336, 256>}, {transform_indices = @transform_4, window_bounds = array<i64: 112, 64>}, {transform_indices = @transform_5, window_bounds = array<i64: 112, 128>}, {transform_indices = @transform_6, window_bounds = array<i64: 112, 256>}, {transform_indices = @transform_7, window_bounds = array<i64: 112, 256>}, {transform_indices = @transform_8, window_bounds = array<i64: 1, 112, 256>}]} {
    %c0 = arith.constant 0 : index
    %c0_0 = arith.constant 0 : index
    %0 = vector.load %arg9[%c0, %c0_0] : memref<112x256xf32, #tpu.memory_space<vmem>>, vector<112x256xf32>
    %c0_1 = arith.constant 0 : index
    %c0_2 = arith.constant 0 : index
    %c0_3 = arith.constant 0 : index
    %1 = vector.load %arg10[%c0_1, %c0_2, %c0_3] : memref<1x112x256xf32, #tpu.memory_space<vmem>>, vector<1x112x256xf32>
    %2 = vector.shape_cast %1 : vector<1x112x256xf32> to vector<112x256xf32>
    %3 = vector.shape_cast %0 : vector<112x256xf32> to vector<1x112x256xf32>
    tpu.vector_store %arg10[%c0_1, %c0_2, %c0_3], %3 {strides = array<i32>} : memref<1x112x256xf32, #tpu.memory_space<vmem>>, vector<1x112x256xf32>,
    %c0_4 = arith.constant 0 : index
    %c0_5 = arith.constant 0 : index
    %4 = vector.load %arg5[%c0_4, %c0_5] : memref<336x256xbf16, #tpu.memory_space<vmem>>, vector<256x256xbf16>
    %c0_6 = arith.constant 0 : index
    %c0_7 = arith.constant 0 : index
    %5 = vector.load %arg6[%c0_6, %c0_7] : memref<112x64xbf16, #tpu.memory_space<vmem>>, vector<112x64xbf16>
    %c0_8 = arith.constant 0 : index
    %c0_9 = arith.constant 0 : index
    %c0_10 = arith.constant 0 : index
    %6 = vector.load %arg2[%c0_8, %c0_9, %c0_10] : memref<1x64x256xbf16, #tpu.memory_space<vmem>>, vector<1x64x256xbf16>
    %7 = vector.shape_cast %6 : vector<1x64x256xbf16> to vector<64x256xbf16>
    %cst = arith.constant dense<0.000000e+00> : vector<64x256xf32>
    %8 = tpu.matmul %7, %4, %cst {dimension_numbers = #tpu.dot_dimension_numbers<[1], [0], [0], [1], [0, 0, 1, 1], [], []>} : vector<64x256xbf16>, vector<256x256xbf16>, vector<64x256xf32> -> vector<64x256xf32>
    %9 = arith.truncf %8 : vector<64x256xf32> to vector<64x256xbf16>
    %cst_11 = arith.constant dense<0.000000e+00> : vector<112x256xf32>
    %10 = tpu.matmul %5, %9, %cst_11 {dimension_numbers = #tpu.dot_dimension_numbers<[1], [0], [0], [1], [0, 0, 1, 1], [], []>} : vector<112x64xbf16>, vector<64x256xbf16>, vector<112x256xf32> -> vector<112x256xf32>
    %c0_12 = arith.constant 0 : index
    %c0_13 = arith.constant 0 : index
    %c0_14 = arith.constant 0 : index
    %11 = vector.load %arg10[%c0_12, %c0_13, %c0_14] : memref<1x112x256xf32, #tpu.memory_space<vmem>>, vector<1x112x256xf32>
    %12 = vector.shape_cast %11 : vector<1x112x256xf32> to vector<112x256xf32>
    %13 = arith.addf %12, %10 : vector<112x256xf32>
    %c0_15 = arith.constant 0 : index
    %c0_16 = arith.constant 0 : index
    %c0_17 = arith.constant 0 : index
    %14 = vector.load %arg10[%c0_15, %c0_16, %c0_17] : memref<1x112x256xf32, #tpu.memory_space<vmem>>, vector<1x112x256xf32>
    %15 = vector.shape_cast %14 : vector<1x112x256xf32> to vector<112x256xf32>
    %16 = vector.shape_cast %13 : vector<112x256xf32> to vector<1x112x256xf32>
    tpu.vector_store %arg10[%c0_15, %c0_16, %c0_17], %16 {strides = array<i32>} : memref<1x112x256xf32, #tpu.memory_space<vmem>>, vector<1x112x256xf32>,
    %c256 = arith.constant 256 : index
    %c0_18 = arith.constant 0 : index
    %17 = vector.load %arg5[%c256, %c0_18] : memref<336x256xbf16, #tpu.memory_space<vmem>>, vector<64x256xbf16>
    %c0_19 = arith.constant 0 : index
    %c0_20 = arith.constant 0 : index
    %18 = vector.load %arg7[%c0_19, %c0_20] : memref<112x128xbf16, #tpu.memory_space<vmem>>, vector<112x128xbf16>
    %c0_21 = arith.constant 0 : index
    %c0_22 = arith.constant 0 : index
    %c0_23 = arith.constant 0 : index
    %19 = vector.load %arg3[%c0_21, %c0_22, %c0_23] : memref<1x128x64xbf16, #tpu.memory_space<vmem>>, vector<1x128x64xbf16>
    %20 = vector.shape_cast %19 : vector<1x128x64xbf16> to vector<128x64xbf16>
    %cst_24 = arith.constant dense<0.000000e+00> : vector<112x64xf32>
    %21 = tpu.matmul %18, %20, %cst_24 {dimension_numbers = #tpu.dot_dimension_numbers<[1], [0], [0], [1], [0, 0, 1, 1], [], []>} : vector<112x128xbf16>, vector<128x64xbf16>, vector<112x64xf32> -> vector<112x64xf32>
    %22 = arith.truncf %21 : vector<112x64xf32> to vector<112x64xbf16>
    %cst_25 = arith.constant dense<0.000000e+00> : vector<112x256xf32>
    %23 = tpu.matmul %22, %17, %cst_25 {dimension_numbers = #tpu.dot_dimension_numbers<[1], [0], [0], [1], [0, 0, 1, 1], [], []>} : vector<112x64xbf16>, vector<64x256xbf16>, vector<112x256xf32> -> vector<112x256xf32>
    %c0_26 = arith.constant 0 : index
    %c0_27 = arith.constant 0 : index
    %c0_28 = arith.constant 0 : index
    %24 = vector.load %arg10[%c0_26, %c0_27, %c0_28] : memref<1x112x256xf32, #tpu.memory_space<vmem>>, vector<1x112x256xf32>
    %25 = vector.shape_cast %24 : vector<1x112x256xf32> to vector<112x256xf32>
    %26 = arith.addf %25, %23 : vector<112x256xf32>
    %c0_29 = arith.constant 0 : index
    %c0_30 = arith.constant 0 : index
    %c0_31 = arith.constant 0 : index
    %27 = vector.load %arg10[%c0_29, %c0_30, %c0_31] : memref<1x112x256xf32, #tpu.memory_space<vmem>>, vector<1x112x256xf32>
    %28 = vector.shape_cast %27 : vector<1x112x256xf32> to vector<112x256xf32>
    %29 = vector.shape_cast %26 : vector<112x256xf32> to vector<1x112x256xf32>
    tpu.vector_store %arg10[%c0_29, %c0_30, %c0_31], %29 {strides = array<i32>} : memref<1x112x256xf32, #tpu.memory_space<vmem>>, vector<1x112x256xf32>,
    %c320 = arith.constant 320 : index
    %c0_32 = arith.constant 0 : index
    %30 = vector.load %arg5[%c320, %c0_32] : memref<336x256xbf16, #tpu.memory_space<vmem>>, vector<16x256xbf16>
    %c0_33 = arith.constant 0 : index
    %c0_34 = arith.constant 0 : index
    %31 = vector.load %arg8[%c0_33, %c0_34] : memref<112x256xbf16, #tpu.memory_space<vmem>>, vector<112x256xbf16>
    %c0_35 = arith.constant 0 : index
    %c0_36 = arith.constant 0 : index
    %c0_37 = arith.constant 0 : index
    %32 = vector.load %arg4[%c0_35, %c0_36, %c0_37] : memref<1x256x16xbf16, #tpu.memory_space<vmem>>, vector<1x256x16xbf16>
    %33 = vector.shape_cast %32 : vector<1x256x16xbf16> to vector<256x16xbf16>
    %cst_38 = arith.constant dense<0.000000e+00> : vector<112x16xf32>
    %34 = tpu.matmul %31, %33, %cst_38 {dimension_numbers = #tpu.dot_dimension_numbers<[1], [0], [0], [1], [0, 0, 1, 1], [], []>} : vector<112x256xbf16>, vector<256x16xbf16>, vector<112x16xf32> -> vector<112x16xf32>
    %35 = arith.truncf %34 : vector<112x16xf32> to vector<112x16xbf16>
    %cst_39 = arith.constant dense<0.000000e+00> : vector<112x256xf32>
    %36 = tpu.matmul %35, %30, %cst_39 {dimension_numbers = #tpu.dot_dimension_numbers<[1], [0], [0], [1], [0, 0, 1, 1], [], []>} : vector<112x16xbf16>, vector<16x256xbf16>, vector<112x256xf32> -> vector<112x256xf32>
    %c0_40 = arith.constant 0 : index
    %c0_41 = arith.constant 0 : index
    %c0_42 = arith.constant 0 : index
    %37 = vector.load %arg10[%c0_40, %c0_41, %c0_42] : memref<1x112x256xf32, #tpu.memory_space<vmem>>, vector<1x112x256xf32>
    %38 = vector.shape_cast %37 : vector<1x112x256xf32> to vector<112x256xf32>
    %39 = arith.addf %38, %36 : vector<112x256xf32>
    %c0_43 = arith.constant 0 : index
    %c0_44 = arith.constant 0 : index
    %c0_45 = arith.constant 0 : index
    %40 = vector.load %arg10[%c0_43, %c0_44, %c0_45] : memref<1x112x256xf32, #tpu.memory_space<vmem>>, vector<1x112x256xf32>
    %41 = vector.shape_cast %40 : vector<1x112x256xf32> to vector<112x256xf32>
    %42 = vector.shape_cast %39 : vector<112x256xf32> to vector<1x112x256xf32>
    tpu.vector_store %arg10[%c0_43, %c0_44, %c0_45], %42 {strides = array<i32>} : memref<1x112x256xf32, #tpu.memory_space<vmem>>, vector<1x112x256xf32>,
    return
  }
  func.func @transform_0(%arg0: i32, %arg1: i32) -> (i32, i32, i32) {
    %c0_i32 = arith.constant 0 : i32
    %c0_i32_0 = arith.constant 0 : i32
    %c0_i32_1 = arith.constant 0 : i32
    return %arg0, %c0_i32, %c0_i32_0 : i32, i32, i32
  }
  func.func @transform_1(%arg0: i32, %arg1: i32) -> (i32, i32, i32) {
    %c0_i32 = arith.constant 0 : i32
    %c0_i32_0 = arith.constant 0 : i32
    %c0_i32_1 = arith.constant 0 : i32
    return %arg0, %c0_i32, %c0_i32_0 : i32, i32, i32
  }
  func.func @transform_2(%arg0: i32, %arg1: i32) -> (i32, i32, i32) {
    %c0_i32 = arith.constant 0 : i32
    %c0_i32_0 = arith.constant 0 : i32
    %c0_i32_1 = arith.constant 0 : i32
    return %arg0, %c0_i32, %c0_i32_0 : i32, i32, i32
  }
  func.func @transform_3(%arg0: i32, %arg1: i32) -> (i32, i32) {
    %c0_i32 = arith.constant 0 : i32
    %c0_i32_0 = arith.constant 0 : i32
    %c0_i32_1 = arith.constant 0 : i32
    return %c0_i32, %c0_i32_0 : i32, i32
  }
  func.func @transform_4(%arg0: i32, %arg1: i32) -> (i32, i32) {
    %c0_i32 = arith.constant 0 : i32
    %c0_i32_0 = arith.constant 0 : i32
    return %arg1, %c0_i32 : i32, i32
  }
  func.func @transform_5(%arg0: i32, %arg1: i32) -> (i32, i32) {
    %c0_i32 = arith.constant 0 : i32
    %c0_i32_0 = arith.constant 0 : i32
    return %arg1, %c0_i32 : i32, i32
  }
  func.func @transform_6(%arg0: i32, %arg1: i32) -> (i32, i32) {
    %c0_i32 = arith.constant 0 : i32
    %c0_i32_0 = arith.constant 0 : i32
    return %arg1, %c0_i32 : i32, i32
  }
  func.func @transform_7(%arg0: i32, %arg1: i32) -> (i32, i32) {
    %c0_i32 = arith.constant 0 : i32
    %c0_i32_0 = arith.constant 0 : i32
    return %arg1, %c0_i32 : i32, i32
  }
  func.func @transform_8(%arg0: i32, %arg1: i32) -> (i32, i32, i32) {
    %c0_i32 = arith.constant 0 : i32
    %c0_i32_0 = arith.constant 0 : i32
    return %arg0, %arg1, %c0_i32 : i32, i32, i32
  }
}

</mosaic_0001>

<llo_original>
// kernel: tpu_custom_call.1
$region0: #{tpu_custom_call.1}
  #allocation0 [shape = 'u32[]', space=smem, size = 0x4, offset = 0x4, fixed_abs, tag = 'smem constant byte address 0x4 - core index']
  #allocation1 [shape = 'u32[144,128]{1,0:T(1,128)}', space=vmem, size = 0x12000, scoped, tag = 'internal scratch']
  %s0 = inlined_call_operand.hbm [shape: bf16[2,64,256], index: 0, kind: input, shape index: {}]
  %s1 = inlined_call_operand.vmem [shape: bf16[2,128,64], index: 1, kind: input, shape index: {}]
  %s2 = inlined_call_operand.vmem [shape: bf16[2,256,16], index: 2, kind: input, shape index: {}]
  %s3 = inlined_call_operand.vmem [shape: bf16[336,256], index: 3, kind: input, shape index: {}]
  %s4 = inlined_call_operand.vmem [shape: bf16[112,64], index: 4, kind: input, shape index: {}]
  %s5 = inlined_call_operand.hbm [shape: bf16[112,128], index: 5, kind: input, shape index: {}]
  %s6 = inlined_call_operand.hbm [shape: bf16[112,256], index: 6, kind: input, shape index: {}]
  %s7 = inlined_call_operand.vmem [shape: f32[112,256], index: 7, kind: input, shape index: {}]
  %s8 = inlined_call_operand.hbm [shape: f32[2,112,256], index: 8, kind: output, shape index: {}]
  %s9 = sld [smem:[#allocation0]]
  $region77: #{tpu_custom_call.1} parent=0
    _
  %s11 = ssub.s32 1, %s9
  %s12 = scalar_select 0, %s11, %s9
  $region1: #{tpu_custom_call.1} parent=0
    #allocation2 [shape = 'u8[65536]{0}', space=vmem, size = 0x10000, scoped, tag = 'input window, operand 0']
    #allocation3 [shape = 's32[2]{0}', space=sflag, size = 0x8, scoped, tag = 'scoped memory for tpu_custom_call.1']
    #allocation4 [shape = 's32[2]{0}', space=sflag, size = 0x8, scoped, tag = 'scoped memory for tpu_custom_call.1']
    #allocation5 [shape = 'u8[28672]{0}', space=vmem, size = 0x7000, scoped, tag = 'input window, operand 5, single buffered']
    #allocation6 [shape = 's32[1]{0}', space=sflag, size = 0x4, scoped, tag = 'scoped memory for tpu_custom_call.1']
    #allocation7 [shape = 'u8[57344]{0}', space=vmem, size = 0xe000, scoped, tag = 'input window, operand 6, single buffered']
    #allocation8 [shape = 'u8[229376]{0}', space=vmem, size = 0x38000, scoped, tag = 'output window, operand 0']
    %13 = vsyncpa [#allocation3], 0
    %s14 = scalar_lea.sflag [#allocation3], 1
    %15 = vsyncpa %s14, 0
    %16 = vsyncpa [#allocation6], 0
    %17 = vsyncpa [#allocation4], 0
    %s18 = scalar_lea.sflag [#allocation4], 1
    %19 = vsyncpa %s18, 0
    loop: start=0, step=1, limit=4
    $region2: #{tpu_custom_call.1} parent=1 // loop_pre_header
      _
    $region3: #{tpu_custom_call.1} parent=1 // loop_header
      %s21 = sphi 0, %s25
      %p22 = scmp.ge.s32.totalorder %s21, 4
      %s28 = sphi 0, %s40
      %s29 = sphi 0, %s36
      %s30 = sphi 0, %s28
      %s31 = sphi 0, %s29
      %s32 = sphi 0, %s30
      %s33 = sphi 0, %s31
      %s43 = sphi 0, %s45
      %s46 = sphi 0, %s43
      %s47 = sphi 0, %s46
      %s63 = sphi 0, %s47
      %s69 = sphi 0, %s71
      %s72 = sphi 0, %s69
      %s73 = sphi 0, %s72
      %s89 = sphi 0, %s73
      %s95 = sphi 0, %s97
      %s98 = sphi 0, %s95
      %s99 = sphi 0, %s98
      %s115 = sphi 0, %s99
      %s119 = sphi 0, %s119
      %s121 = sphi 0, %s119
      %s122 = sphi 0, %s121
      %s136 = sphi 0, %s122
      %s142 = sphi 0, %s144
      %s145 = sphi 0, %s142
      %s146 = sphi 0, %s145
      %s162 = sphi 0, %s146
      %s168 = sphi 0, %s170
      %s171 = sphi 0, %s168
      %s172 = sphi 0, %s171
      %s188 = sphi 0, %s172
      %s194 = sphi 0, %s196
      %s197 = sphi 0, %s194
      %s198 = sphi 0, %s197
      %s214 = sphi 0, %s198
      %s220 = sphi 0, %s222
      %s223 = sphi 0, %s220
      %s224 = sphi 0, %s223
      %s240 = sphi 0, %s224
      %s248 = sphi 0, %s250
      %s251 = sphi 0, %s248
      %s252 = sphi 0, %s251
      %s268 = sphi 0, %s252
    $region4: #{tpu_custom_call.1} parent=1 // loop_header_branch
      %24 = sbr.rel (%p22) target = $region8
    $region5: #{tpu_custom_call.1} parent=1 // loop_body
      %s26 = ssub.s32 %s21, 1
      %s27 = ssub.s32 %s21, 2
      %s34 = sadd.s32 1, %s29
      %p35 = scmp.ge.s32.totalorder %s34, 1
      %s36 = scalar_select %p35, 0, %s34
      %s37 = sadd.s32 1, %s28
      %s38 = scalar_select %p35, %s37, %s28
      %p39 = scmp.ge.s32.totalorder %s38, 2
      %s40 = scalar_select %p39, 0, %s38
      %s41 = ssub.s32 %s28, %s40
      %p42 = scmp.eq.s32.totalorder %s41, 0
      %s44 = sadd.s32 %s43, 1
      %s45 = scalar_select %p42, %s43, %s44
      %p48 = pneg %p42
      %p49 = scmp.eq.s32.totalorder %s21, 1
      %p50 = por %p48, %p49
      %p51 = scmp.ne.s32.totalorder %s43, %s46
      %p52 = scmp.eq.s32.totalorder %s21, 0
      %p53 = por %p51, %p52
      %p54 = scmp.ne.s32.totalorder %s43, %s46
      %p55 = scmp.eq.s32.totalorder %s26, 1
      %p56 = por %p54, %p55
      %p57 = scmp.ne.s32.totalorder %s46, %s47
      %p58 = scmp.eq.s32.totalorder %s26, 0
      %p59 = por %p57, %p58
      %p60 = scmp.ne.s32.totalorder %s46, %s47
      %p61 = scmp.eq.s32.totalorder %s27, 1
      %p62 = por %p60, %p61
      %p64 = scmp.ne.s32.totalorder %s47, %s63
      %p65 = scmp.eq.s32.totalorder %s27, 0
      %p66 = por %p64, %p65
      %s67 = ssub.s32 %s28, %s40
      %p68 = scmp.eq.s32.totalorder %s67, 0
      %s70 = sadd.s32 %s69, 1
      %s71 = scalar_select %p68, %s69, %s70
      %p74 = pneg %p68
      %p75 = scmp.eq.s32.totalorder %s21, 1
      %p76 = por %p74, %p75
      %p77 = scmp.ne.s32.totalorder %s69, %s72
      %p78 = scmp.eq.s32.totalorder %s21, 0
      %p79 = por %p77, %p78
      %p80 = scmp.ne.s32.totalorder %s69, %s72
      %p81 = scmp.eq.s32.totalorder %s26, 1
      %p82 = por %p80, %p81
      %p83 = scmp.ne.s32.totalorder %s72, %s73
      %p84 = scmp.eq.s32.totalorder %s26, 0
      %p85 = por %p83, %p84
      %p86 = scmp.ne.s32.totalorder %s72, %s73
      %p87 = scmp.eq.s32.totalorder %s27, 1
      %p88 = por %p86, %p87
      %p90 = scmp.ne.s32.totalorder %s73, %s89
      %p91 = scmp.eq.s32.totalorder %s27, 0
      %p92 = por %p90, %p91
      %s93 = ssub.s32 %s28, %s40
      %p94 = scmp.eq.s32.totalorder %s93, 0
      %s96 = sadd.s32 %s95, 1
      %s97 = scalar_select %p94, %s95, %s96
      %p100 = pneg %p94
      %p101 = scmp.eq.s32.totalorder %s21, 1
      %p102 = por %p100, %p101
      %p103 = scmp.ne.s32.totalorder %s95, %s98
      %p104 = scmp.eq.s32.totalorder %s21, 0
      %p105 = por %p103, %p104
      %p106 = scmp.ne.s32.totalorder %s95, %s98
      %p107 = scmp.eq.s32.totalorder %s26, 1
      %p108 = por %p106, %p107
      %p109 = scmp.ne.s32.totalorder %s98, %s99
      %p110 = scmp.eq.s32.totalorder %s26, 0
      %p111 = por %p109, %p110
      %p112 = scmp.ne.s32.totalorder %s98, %s99
      %p113 = scmp.eq.s32.totalorder %s27, 1
      %p114 = por %p112, %p113
      %p116 = scmp.ne.s32.totalorder %s99, %s115
      %p117 = scmp.eq.s32.totalorder %s27, 0
      %p118 = por %p116, %p117
      %s120 = sadd.s32 %s119, 1
      %p123 = scmp.eq.s32.totalorder %s21, 1
      %p124 = scmp.ne.s32.totalorder %s119, %s121
      %p125 = scmp.eq.s32.totalorder %s21, 0
      %p126 = por %p124, %p125
      %p127 = scmp.ne.s32.totalorder %s119, %s121
      %p128 = scmp.eq.s32.totalorder %s26, 1
      %p129 = por %p127, %p128
      %p130 = scmp.ne.s32.totalorder %s121, %s122
      %p131 = scmp.eq.s32.totalorder %s26, 0
      %p132 = por %p130, %p131
      %p133 = scmp.ne.s32.totalorder %s121, %s122
      %p134 = scmp.eq.s32.totalorder %s27, 1
      %p135 = por %p133, %p134
      %p137 = scmp.ne.s32.totalorder %s122, %s136
      %p138 = scmp.eq.s32.totalorder %s27, 0
      %p139 = por %p137, %p138
      %s140 = ssub.s32 %s29, %s36
      %p141 = scmp.eq.s32.totalorder %s140, 0
      %s143 = sadd.s32 %s142, 1
      %s144 = scalar_select %p141, %s142, %s143
      %p147 = pneg %p141
      %p148 = scmp.eq.s32.totalorder %s21, 1
      %p149 = por %p147, %p148
      %p150 = scmp.ne.s32.totalorder %s142, %s145
      %p151 = scmp.eq.s32.totalorder %s21, 0
      %p152 = por %p150, %p151
      %p153 = scmp.ne.s32.totalorder %s142, %s145
      %p154 = scmp.eq.s32.totalorder %s26, 1
      %p155 = por %p153, %p154
      %p156 = scmp.ne.s32.totalorder %s145, %s146
      %p157 = scmp.eq.s32.totalorder %s26, 0
      %p158 = por %p156, %p157
      %p159 = scmp.ne.s32.totalorder %s145, %s146
      %p160 = scmp.eq.s32.totalorder %s27, 1
      %p161 = por %p159, %p160
      %p163 = scmp.ne.s32.totalorder %s146, %s162
      %p164 = scmp.eq.s32.totalorder %s27, 0
      %p165 = por %p163, %p164
      %s166 = ssub.s32 %s29, %s36
      %p167 = scmp.eq.s32.totalorder %s166, 0
      %s169 = sadd.s32 %s168, 1
      %s170 = scalar_select %p167, %s168, %s169
      %p173 = pneg %p167
      %p174 = scmp.eq.s32.totalorder %s21, 1
      %p175 = por %p173, %p174
      %p176 = scmp.ne.s32.totalorder %s168, %s171
      %p177 = scmp.eq.s32.totalorder %s21, 0
      %p178 = por %p176, %p177
      %p179 = scmp.ne.s32.totalorder %s168, %s171
      %p180 = scmp.eq.s32.totalorder %s26, 1
      %p181 = por %p179, %p180
      %p182 = scmp.ne.s32.totalorder %s171, %s172
      %p183 = scmp.eq.s32.totalorder %s26, 0
      %p184 = por %p182, %p183
      %p185 = scmp.ne.s32.totalorder %s171, %s172
      %p186 = scmp.eq.s32.totalorder %s27, 1
      %p187 = por %p185, %p186
      %p189 = scmp.ne.s32.totalorder %s172, %s188
      %p190 = scmp.eq.s32.totalorder %s27, 0
      %p191 = por %p189, %p190
      %s192 = ssub.s32 %s29, %s36
      %p193 = scmp.eq.s32.totalorder %s192, 0
      %s195 = sadd.s32 %s194, 1
      %s196 = scalar_select %p193, %s194, %s195
      %p199 = pneg %p193
      %p200 = scmp.eq.s32.totalorder %s21, 1
      %p201 = por %p199, %p200
      %p202 = scmp.ne.s32.totalorder %s194, %s197
      %p203 = scmp.eq.s32.totalorder %s21, 0
      %p204 = por %p202, %p203
      %p205 = scmp.ne.s32.totalorder %s194, %s197
      %p206 = scmp.eq.s32.totalorder %s26, 1
      %p207 = por %p205, %p206
      %p208 = scmp.ne.s32.totalorder %s197, %s198
      %p209 = scmp.eq.s32.totalorder %s26, 0
      %p210 = por %p208, %p209
      %p211 = scmp.ne.s32.totalorder %s197, %s198
      %p212 = scmp.eq.s32.totalorder %s27, 1
      %p213 = por %p211, %p212
      %p215 = scmp.ne.s32.totalorder %s198, %s214
      %p216 = scmp.eq.s32.totalorder %s27, 0
      %p217 = por %p215, %p216
      %s218 = ssub.s32 %s29, %s36
      %p219 = scmp.eq.s32.totalorder %s218, 0
      %s221 = sadd.s32 %s220, 1
      %s222 = scalar_select %p219, %s220, %s221
      %p225 = pneg %p219
      %p226 = scmp.eq.s32.totalorder %s21, 1
      %p227 = por %p225, %p226
      %p228 = scmp.ne.s32.totalorder %s220, %s223
      %p229 = scmp.eq.s32.totalorder %s21, 0
      %p230 = por %p228, %p229
      %p231 = scmp.ne.s32.totalorder %s220, %s223
      %p232 = scmp.eq.s32.totalorder %s26, 1
      %p233 = por %p231, %p232
      %p234 = scmp.ne.s32.totalorder %s223, %s224
      %p235 = scmp.eq.s32.totalorder %s26, 0
      %p236 = por %p234, %p235
      %p237 = scmp.ne.s32.totalorder %s223, %s224
      %p238 = scmp.eq.s32.totalorder %s27, 1
      %p239 = por %p237, %p238
      %p241 = scmp.ne.s32.totalorder %s224, %s240
      %p242 = scmp.eq.s32.totalorder %s27, 0
      %p243 = por %p241, %p242
      %s244 = ssub.s32 %s28, %s40
      %s245 = ssub.s32 %s29, %s36
      %s246 = sor.u32 %s244, %s245
      %p247 = scmp.eq.s32.totalorder %s246, 0
      %s249 = sadd.s32 %s248, 1
      %s250 = scalar_select %p247, %s248, %s249
      %p253 = pneg %p247
      %p254 = scmp.eq.s32.totalorder %s21, 1
      %p255 = por %p253, %p254
      %p256 = scmp.ne.s32.totalorder %s248, %s251
      %p257 = scmp.eq.s32.totalorder %s21, 0
      %p258 = por %p256, %p257
      %p259 = scmp.ne.s32.totalorder %s248, %s251
      %p260 = scmp.eq.s32.totalorder %s26, 1
      %p261 = por %p259, %p260
      %p262 = scmp.ne.s32.totalorder %s251, %s252
      %p263 = scmp.eq.s32.totalorder %s26, 0
      %p264 = por %p262, %p263
      %p265 = scmp.ne.s32.totalorder %s251, %s252
      %p266 = scmp.eq.s32.totalorder %s27, 1
      %p267 = por %p265, %p266
      %p269 = scmp.ne.s32.totalorder %s252, %s268
      %p270 = scmp.eq.s32.totalorder %s27, 0
      %p271 = por %p269, %p270
      %p272 = scmp.le.s32.totalorder 1, %s21
      %p273 = scmp.lt.s32.totalorder %s21, 3
      %p274 = pnand %p272, %p273
      %p275 = pneg %p274
      // Predicated region
      $region9: #{tpu_custom_call.1} parent=5 // pred_check
        _
      $region10: #{tpu_custom_call.1} parent=5 // pred_check_branch
        %277 = sbr.rel (%p274) target = $region12
      $region11: #{tpu_custom_call.1} parent=5 // pred_region
        %s278 = ssub.s32 %s21, 1
        // Predicated region
        $region13: #{tpu_custom_call.1} parent=11 // pred_check
          %p279 = pneg %p132
        $region14: #{tpu_custom_call.1} parent=11 // pred_check_branch
          %281 = sbr.rel (%p279) target = $region16
        $region15: #{tpu_custom_call.1} parent=11 // pred_region
          _
        $region16: #{tpu_custom_call.1} parent=11 // pred_fallthru
          _
        // Predicated region
        $region17: #{tpu_custom_call.1} parent=11 // pred_check
          %p282 = pneg %p158
        $region18: #{tpu_custom_call.1} parent=11 // pred_check_branch
          %284 = sbr.rel (%p282) target = $region20
        $region19: #{tpu_custom_call.1} parent=11 // pred_region
          %s285 = smul.u32 14, %s31
          %p286 = scmp.lt.s32.totalorder %s285, 13
          %s287 = scalar_select %p286, %s285, 13
          %s288 = smul.addr %s287, 4
          %s289 = scalar_lea.vmem %s4, %s288
          %s290 = smul.u32 14, %s31
        $region20: #{tpu_custom_call.1} parent=11 // pred_fallthru
          _
        // Predicated region
        $region21: #{tpu_custom_call.1} parent=11 // pred_check
          %p291 = pneg %p184
        $region22: #{tpu_custom_call.1} parent=11 // pred_check_branch
          %293 = sbr.rel (%p291) target = $region24
        $region23: #{tpu_custom_call.1} parent=11 // pred_region
          %s294 = smul.u32 14, %s31
          %s296 = ssub.s32 896, 896
          %297 = vsyncadd [#allocation6], %s296
          %s298 = smul.addr %s294, 64
          %s299 = scalar_lea.hbm %s5, %s298
          %s300 = sshll.u32 [#allocation5], 4
          %s301 = int_to_ptr.vmem [resolvable:$true] %s300
          %306 = dma.hbm_to_vmem [thread:$0]  %s299, 896, %s301, [#allocation6], 64, 64, 4
        $region24: #{tpu_custom_call.1} parent=11 // pred_fallthru
          _
        // Predicated region
        $region25: #{tpu_custom_call.1} parent=11 // pred_check
          %p307 = pneg %p210
        $region26: #{tpu_custom_call.1} parent=11 // pred_check_branch
          %309 = sbr.rel (%p307) target = $region28
        $region27: #{tpu_custom_call.1} parent=11 // pred_region
          %s310 = smul.u32 14, %s31
          %s312 = ssub.s32 1792, 1792
          %313 = vsyncadd [#allocation6], %s312
          %s314 = smul.addr %s310, 2
          %s315 = smul.addr %s314, 64
          %s316 = scalar_lea.hbm %s6, %s315
          %s317 = sshll.u32 [#allocation7], 4
          %s318 = int_to_ptr.vmem [resolvable:$true] %s317
          %323 = dma.hbm_to_vmem [thread:$0]  %s316, 1792, %s318, [#allocation6], 128, 128, 8
        $region28: #{tpu_custom_call.1} parent=11 // pred_fallthru
          _
        // Predicated region
        $region29: #{tpu_custom_call.1} parent=11 // pred_check
          %p324 = pneg %p236
        $region30: #{tpu_custom_call.1} parent=11 // pred_check_branch
          %326 = sbr.rel (%p324) target = $region32
        $region31: #{tpu_custom_call.1} parent=11 // pred_region
          %s327 = smul.u32 14, %s31
          %p328 = scmp.lt.s32.totalorder %s327, 13
          %s329 = scalar_select %p328, %s327, 13
          %s330 = smul.addr %s329, 2
          %s331 = smul.addr %s330, 8
          %s332 = scalar_lea.vmem %s7, %s331
          %s333 = smul.u32 14, %s31
        $region32: #{tpu_custom_call.1} parent=11 // pred_fallthru
          _
      $region12: #{tpu_custom_call.1} parent=5 // pred_fallthru
        _
      %p334 = scmp.lt.s32.totalorder %s21, 2
      // Predicated region
      $region33: #{tpu_custom_call.1} parent=5 // pred_check
        %p335 = pneg %p334
      $region34: #{tpu_custom_call.1} parent=5 // pred_check_branch
        %337 = sbr.rel (%p335) target = $region36
      $region35: #{tpu_custom_call.1} parent=5 // pred_region
        // Predicated region
        $region37: #{tpu_custom_call.1} parent=35 // pred_check
          %p338 = pneg %p53
        $region38: #{tpu_custom_call.1} parent=35 // pred_check_branch
          %340 = sbr.rel (%p338) target = $region40
        $region39: #{tpu_custom_call.1} parent=35 // pred_region
          %s341 = sand.u32 %s43, 1
          %s342 = scalar_lea.sflag [#allocation3], %s341
          %s343 = sand.u32 %s43, 1
          %s344 = smul.addr %s343, 64
          %s345 = scalar_lea.vmem [#allocation2], %s344
          %s347 = ssub.s32 1024, 1024
          %348 = vsyncadd %s342, %s347
          %s349 = smul.addr %s28, 16
          %s350 = smul.addr %s349, 64
          %s351 = scalar_lea.hbm %s0, %s350
          %s352 = sshll.u32 %s345, 4
          %s353 = int_to_ptr.vmem [resolvable:$true] %s352
          %358 = dma.hbm_to_vmem [thread:$0]  %s351, 1024, %s353, %s342, 128, 128, 8
        $region40: #{tpu_custom_call.1} parent=35 // pred_fallthru
          _
        // Predicated region
        $region41: #{tpu_custom_call.1} parent=35 // pred_check
          %p359 = pneg %p79
        $region42: #{tpu_custom_call.1} parent=35 // pred_check_branch
          %361 = sbr.rel (%p359) target = $region44
        $region43: #{tpu_custom_call.1} parent=35 // pred_region
          %p362 = scmp.lt.s32.totalorder %s28, 1
          %s363 = scalar_select %p362, %s28, 1
          %s364 = smul.addr %s363, 16
          %s365 = smul.addr %s364, 4
          %s366 = scalar_lea.vmem %s1, %s365
        $region44: #{tpu_custom_call.1} parent=35 // pred_fallthru
          _
        // Predicated region
        $region45: #{tpu_custom_call.1} parent=35 // pred_check
          %p367 = pneg %p105
        $region46: #{tpu_custom_call.1} parent=35 // pred_check_branch
          %369 = sbr.rel (%p367) target = $region48
        $region47: #{tpu_custom_call.1} parent=35 // pred_region
          %p370 = scmp.lt.s32.totalorder %s28, 1
          %s371 = scalar_select %p370, %s28, 1
          %s372 = smul.addr %s371, 32
          %s373 = smul.addr %s372, 4
          %s374 = scalar_lea.vmem %s2, %s373
        $region48: #{tpu_custom_call.1} parent=35 // pred_fallthru
          _
      $region36: #{tpu_custom_call.1} parent=5 // pred_fallthru
        _
      %p375 = scmp.le.s32.totalorder 1, %s21
      %p376 = scmp.lt.s32.totalorder %s21, 3
      %p377 = pnand %p375, %p376
      %p378 = pneg %p377
      // Predicated region
      $region49: #{tpu_custom_call.1} parent=5 // pred_check
        _
      $region50: #{tpu_custom_call.1} parent=5 // pred_check_branch
        %380 = sbr.rel (%p377) target = $region52
      $region51: #{tpu_custom_call.1} parent=5 // pred_region
        %s381 = ssub.s32 %s21, 1
        %s382 = sand.u32 %s46, 1
        %s383 = scalar_lea.sflag [#allocation3], %s382
        %s384 = sand.u32 %s46, 1
        %s385 = smul.addr %s384, 64
        %s386 = scalar_lea.vmem [#allocation2], %s385
        // Predicated region
        $region53: #{tpu_custom_call.1} parent=51 // pred_check
          %p387 = pneg %p59
        $region54: #{tpu_custom_call.1} parent=51 // pred_check_branch
          %389 = sbr.rel (%p387) target = $region56
        $region55: #{tpu_custom_call.1} parent=51 // pred_region
          %390 = dma.done %s383, 1024
        $region56: #{tpu_custom_call.1} parent=51 // pred_fallthru
          _
        // Predicated region
        $region57: #{tpu_custom_call.1} parent=51 // pred_check
          %p391 = pneg %p184
        $region58: #{tpu_custom_call.1} parent=51 // pred_check_branch
          %393 = sbr.rel (%p391) target = $region60
        $region59: #{tpu_custom_call.1} parent=51 // pred_region
          %394 = dma.done [#allocation6], 896
        $region60: #{tpu_custom_call.1} parent=51 // pred_fallthru
          _
        // Predicated region
        $region61: #{tpu_custom_call.1} parent=51 // pred_check
          %p395 = pneg %p210
        $region62: #{tpu_custom_call.1} parent=51 // pred_check_branch
          %397 = sbr.rel (%p395) target = $region64
        $region63: #{tpu_custom_call.1} parent=51 // pred_region
          %398 = dma.done [#allocation6], 1792
        $region64: #{tpu_custom_call.1} parent=51 // pred_fallthru
          _
        %s399 = sand.u32 %s46, 1
        %s400 = scalar_lea.sflag [#allocation3], %s399
        %s401 = sand.u32 %s46, 1
        %s402 = smul.addr %s401, 64
        %s403 = scalar_lea.vmem [#allocation2], %s402
        %p404 = pneg %p59
        %p405 = pneg %p56
        %p406 = scmp.lt.s32.totalorder %s30, 1
        %s407 = scalar_select %p406, %s30, 1
        %s408 = smul.addr %s407, 16
        %s409 = smul.addr %s408, 4
        %s410 = scalar_lea.vmem %s1, %s409
        %p411 = pneg %p85
        %p412 = pneg %p82
        %p413 = scmp.lt.s32.totalorder %s30, 1
        %s414 = scalar_select %p413, %s30, 1
        %s415 = smul.addr %s414, 32
        %s416 = smul.addr %s415, 4
        %s417 = scalar_lea.vmem %s2, %s416
        %p418 = pneg %p111
        %p419 = pneg %p108
        %p420 = pneg %p132
        %p421 = pneg %p129
        %s422 = smul.u32 14, %s31
        %p423 = scmp.lt.s32.totalorder %s422, 13
        %s424 = scalar_select %p423, %s422, 13
        %s425 = smul.addr %s424, 4
        %s426 = scalar_lea.vmem %s4, %s425
        %p427 = pneg %p158
        %p428 = pneg %p155
        %p429 = pneg %p184
        %p430 = pneg %p181
        %p431 = pneg %p210
        %p432 = pneg %p207
        %s433 = smul.u32 14, %s31
        %p434 = scmp.lt.s32.totalorder %s433, 13
        %s435 = scalar_select %p434, %s433, 13
        %s436 = smul.addr %s435, 2
        %s437 = smul.addr %s436, 8
        %s438 = scalar_lea.vmem %s7, %s437
        %p439 = pneg %p236
        %p440 = pneg %p233
        %p441 = pneg %p264
        %p442 = pneg %p261
        %s443 = sand.u32 %s251, 1
        %s444 = scalar_lea.sflag [#allocation4], %s443
        %s445 = sand.u32 %s251, 1
        %s446 = smul.addr %s445, 224
        %s447 = scalar_lea.vmem [#allocation8], %s446
        %p448 = scmp.lt.s32.totalorder %s30, 1
        %s449 = scalar_select %p448, %s30, 1
        %s450 = smul.addr %s449, 16
        %s451 = smul.addr %s450, 4
        %s452 = scalar_lea.vmem %s1, %s451
        %p453 = scmp.lt.s32.totalorder %s30, 1
        %s454 = scalar_select %p453, %s30, 1
        %s455 = smul.addr %s454, 32
        %s456 = smul.addr %s455, 4
        %s457 = scalar_lea.vmem %s2, %s456
        %s458 = smul.u32 14, %s31
        %p459 = scmp.lt.s32.totalorder %s458, 13
        %s460 = scalar_select %p459, %s458, 13
        %s461 = smul.addr %s460, 4
        %s462 = scalar_lea.vmem %s4, %s461
        %s463 = smul.u32 14, %s31
        %s464 = smul.u32 14, %s31
        %s465 = smul.u32 14, %s31
        %s466 = smul.u32 14, %s31
        %p467 = scmp.lt.s32.totalorder %s466, 13
        %s468 = scalar_select %p467, %s466, 13
        %s469 = smul.addr %s468, 2
        %s470 = smul.addr %s469, 8
        %s471 = scalar_lea.vmem %s7, %s470
        %s472 = smul.u32 14, %s31
        %s473 = smul.u32 14, %s31
        %v475 = vld [vmem:[%s471] sm:$0xff]
        %v476 = vld [vmem:[%s471 + $0x8] sm:$0xff]
        %v477 = vld [vmem:[%s471 + $0x10] sm:$0xff]
        %v478 = vld [vmem:[%s471 + $0x18] sm:$0xff]
        %v479 = vld [vmem:[%s471 + $0x20] sm:$0xff]
        %v480 = vld [vmem:[%s471 + $0x28] sm:$0xff]
        %v481 = vld [vmem:[%s471 + $0x30] sm:$0xff]
        %v482 = vld [vmem:[%s471 + $0x38] sm:$0xff]
        %v483 = vld [vmem:[%s471 + $0x40] sm:$0xff]
        %v484 = vld [vmem:[%s471 + $0x48] sm:$0xff]
        %v485 = vld [vmem:[%s471 + $0x50] sm:$0xff]
        %v486 = vld [vmem:[%s471 + $0x58] sm:$0xff]
        %v487 = vld [vmem:[%s471 + $0x60] sm:$0xff]
        %v488 = vld [vmem:[%s471 + $0x68] sm:$0xff]
        %v489 = vld [vmem:[%s471 + $0x70] sm:$0xff]
        %v490 = vld [vmem:[%s471 + $0x78] sm:$0xff]
        %v491 = vld [vmem:[%s471 + $0x80] sm:$0xff]
        %v492 = vld [vmem:[%s471 + $0x88] sm:$0xff]
        %v493 = vld [vmem:[%s471 + $0x90] sm:$0xff]
        %v494 = vld [vmem:[%s471 + $0x98] sm:$0xff]
        %v495 = vld [vmem:[%s471 + $0xa0] sm:$0xff]
        %v496 = vld [vmem:[%s471 + $0xa8] sm:$0xff]
        %v497 = vld [vmem:[%s471 + $0xb0] sm:$0xff]
        %v498 = vld [vmem:[%s471 + $0xb8] sm:$0xff]
        %v499 = vld [vmem:[%s471 + $0xc0] sm:$0xff]
        %v500 = vld [vmem:[%s471 + $0xc8] sm:$0xff]
        %v501 = vld [vmem:[%s471 + $0xd0] sm:$0xff]
        %v502 = vld [vmem:[%s471 + $0xd8] sm:$0xff]
        %503 = vst [vmem:[%s447] sm:$0xff] %v475
        %504 = vst [vmem:[%s447 + $0x8] sm:$0xff] %v476
        %505 = vst [vmem:[%s447 + $0x10] sm:$0xff] %v477
        %506 = vst [vmem:[%s447 + $0x18] sm:$0xff] %v478
        %507 = vst [vmem:[%s447 + $0x20] sm:$0xff] %v479
        %508 = vst [vmem:[%s447 + $0x28] sm:$0xff] %v480
        %509 = vst [vmem:[%s447 + $0x30] sm:$0xff] %v481
        %510 = vst [vmem:[%s447 + $0x38] sm:$0xff] %v482
        %511 = vst [vmem:[%s447 + $0x40] sm:$0xff] %v483
        %512 = vst [vmem:[%s447 + $0x48] sm:$0xff] %v484
        %513 = vst [vmem:[%s447 + $0x50] sm:$0xff] %v485
        %514 = vst [vmem:[%s447 + $0x58] sm:$0xff] %v486
        %515 = vst [vmem:[%s447 + $0x60] sm:$0xff] %v487
        %516 = vst [vmem:[%s447 + $0x68] sm:$0xff] %v488
        %517 = vst [vmem:[%s447 + $0x70] sm:$0xff] %v489
        %518 = vst [vmem:[%s447 + $0x78] sm:$0xff] %v490
        %519 = vst [vmem:[%s447 + $0x80] sm:$0xff] %v491
        %520 = vst [vmem:[%s447 + $0x88] sm:$0xff] %v492
        %521 = vst [vmem:[%s447 + $0x90] sm:$0xff] %v493
        %522 = vst [vmem:[%s447 + $0x98] sm:$0xff] %v494
        %523 = vst [vmem:[%s447 + $0xa0] sm:$0xff] %v495
        %524 = vst [vmem:[%s447 + $0xa8] sm:$0xff] %v496
        %525 = vst [vmem:[%s447 + $0xb0] sm:$0xff] %v497
        %526 = vst [vmem:[%s447 + $0xb8] sm:$0xff] %v498
        %527 = vst [vmem:[%s447 + $0xc0] sm:$0xff] %v499
        %528 = vst [vmem:[%s447 + $0xc8] sm:$0xff] %v500
        %529 = vst [vmem:[%s447 + $0xd0] sm:$0xff] %v501
        %530 = vst [vmem:[%s447 + $0xd8] sm:$0xff] %v502
        %v531 = vld [vmem:[%s3] sm:$0xff]
        %v532 = vld [vmem:[%s3 + $0x8] sm:$0xff]
        %v533 = vld [vmem:[%s3 + $0x10] sm:$0xff]
        %v534 = vld [vmem:[%s3 + $0x18] sm:$0xff]
        %v535 = vld [vmem:[%s3 + $0x20] sm:$0xff]
        %v536 = vld [vmem:[%s3 + $0x28] sm:$0xff]
        %v537 = vld [vmem:[%s3 + $0x30] sm:$0xff]
        %v538 = vld [vmem:[%s3 + $0x38] sm:$0xff]
        %v539 = vld [vmem:[%s3 + $0x40] sm:$0xff]
        %v540 = vld [vmem:[%s3 + $0x48] sm:$0xff]
        %v541 = vld [vmem:[%s3 + $0x50] sm:$0xff]
        %v542 = vld [vmem:[%s3 + $0x58] sm:$0xff]
        %v543 = vld [vmem:[%s3 + $0x60] sm:$0xff]
        %v544 = vld [vmem:[%s3 + $0x68] sm:$0xff]
        %v545 = vld [vmem:[%s3 + $0x70] sm:$0xff]
        %v546 = vld [vmem:[%s3 + $0x78] sm:$0xff]
        %v547 = vld [vmem:[%s3 + $0x80] sm:$0xff]
        %v548 = vld [vmem:[%s3 + $0x88] sm:$0xff]
        %v549 = vld [vmem:[%s3 + $0x90] sm:$0xff]
        %v550 = vld [vmem:[%s3 + $0x98] sm:$0xff]
        %v551 = vld [vmem:[%s3 + $0xa0] sm:$0xff]
        %v552 = vld [vmem:[%s3 + $0xa8] sm:$0xff]
        %v553 = vld [vmem:[%s3 + $0xb0] sm:$0xff]
        %v554 = vld [vmem:[%s3 + $0xb8] sm:$0xff]
        %v555 = vld [vmem:[%s3 + $0xc0] sm:$0xff]
        %v556 = vld [vmem:[%s3 + $0xc8] sm:$0xff]
        %v557 = vld [vmem:[%s3 + $0xd0] sm:$0xff]
        %v558 = vld [vmem:[%s3 + $0xd8] sm:$0xff]
        %v559 = vld [vmem:[%s3 + $0xe0] sm:$0xff]
        %v560 = vld [vmem:[%s3 + $0xe8] sm:$0xff]
        %v561 = vld [vmem:[%s3 + $0xf0] sm:$0xff]
        %v562 = vld [vmem:[%s3 + $0xf8] sm:$0xff]
        %v563 = vld [vmem:[%s462] sm:$0xf]
        %v564 = vld [vmem:[%s462 + $0x4] sm:$0xf]
        %v565 = vld [vmem:[%s462 + $0x8] sm:$0xf]
        %v566 = vld [vmem:[%s462 + $0xc] sm:$0xf]
        %v567 = vld [vmem:[%s462 + $0x10] sm:$0xf]
        %v568 = vld [vmem:[%s462 + $0x14] sm:$0xf]
        %v569 = vld [vmem:[%s462 + $0x18] sm:$0xf]
        %v570 = vld [vmem:[%s462 + $0x1c] sm:$0xf]
        %v571 = vld [vmem:[%s462 + $0x20] sm:$0xf]
        %v572 = vld [vmem:[%s462 + $0x24] sm:$0xf]
        %v573 = vld [vmem:[%s462 + $0x28] sm:$0xf]
        %v574 = vld [vmem:[%s462 + $0x2c] sm:$0xf]
        %v575 = vld [vmem:[%s462 + $0x30] sm:$0xf]
        %v576 = vld [vmem:[%s462 + $0x34] sm:$0xf]
        %v577 = vld [vmem:[%s386] sm:$0xff]
        %v578 = vld [vmem:[%s386 + $0x8] sm:$0xff]
        %v579 = vld [vmem:[%s386 + $0x10] sm:$0xff]
        %v580 = vld [vmem:[%s386 + $0x18] sm:$0xff]
        %v581 = vld [vmem:[%s386 + $0x20] sm:$0xff]
        %v582 = vld [vmem:[%s386 + $0x28] sm:$0xff]
        %v583 = vld [vmem:[%s386 + $0x30] sm:$0xff]
        %v584 = vld [vmem:[%s386 + $0x38] sm:$0xff]
        %v593 = vunpack.c.l.b16 %v577
        %v594 = vunpack.c.h.b16 %v577
        %v595 = vunpack.c.l.b16 %v578
        %v596 = vunpack.c.h.b16 %v578
        %v597 = vunpack.c.l.b16 %v579
        %v598 = vunpack.c.h.b16 %v579
        %v599 = vunpack.c.l.b16 %v580
        %v600 = vunpack.c.h.b16 %v580
        %v601 = vunpack.c.l.b16 %v581
        %v602 = vunpack.c.h.b16 %v581
        %v603 = vunpack.c.l.b16 %v582
        %v604 = vunpack.c.h.b16 %v582
        %v605 = vunpack.c.l.b16 %v583
        %v606 = vunpack.c.h.b16 %v583
        %v607 = vunpack.c.l.b16 %v584
        %v608 = vunpack.c.h.b16 %v584
        %v609 = vpack.c.b16 %v595, %v593
        %v610 = vpack.c.b16 %v596, %v594
        %v611 = vpack.c.b16 %v599, %v597
        %v612 = vpack.c.b16 %v600, %v598
        %v613 = vpack.c.b16 %v603, %v601
        %v614 = vpack.c.b16 %v604, %v602
        %v615 = vpack.c.b16 %v607, %v605
        %v616 = vpack.c.b16 %v608, %v606
        %v657 = vunpack.c.l.b16 %v531
        %v658 = vunpack.c.h.b16 %v531
        %v659 = vunpack.c.l.b16 %v532
        %v660 = vunpack.c.h.b16 %v532
        %v661 = vunpack.c.l.b16 %v533
        %v662 = vunpack.c.h.b16 %v533
        %v663 = vunpack.c.l.b16 %v534
        %v664 = vunpack.c.h.b16 %v534
        %v665 = vunpack.c.l.b16 %v535
        %v666 = vunpack.c.h.b16 %v535
        %v667 = vunpack.c.l.b16 %v536
        %v668 = vunpack.c.h.b16 %v536
        %v669 = vunpack.c.l.b16 %v537
        %v670 = vunpack.c.h.b16 %v537
        %v671 = vunpack.c.l.b16 %v538
        %v672 = vunpack.c.h.b16 %v538
        %v673 = vunpack.c.l.b16 %v539
        %v674 = vunpack.c.h.b16 %v539
        %v675 = vunpack.c.l.b16 %v540
        %v676 = vunpack.c.h.b16 %v540
        %v677 = vunpack.c.l.b16 %v541
        %v678 = vunpack.c.h.b16 %v541
        %v679 = vunpack.c.l.b16 %v542
        %v680 = vunpack.c.h.b16 %v542
        %v681 = vunpack.c.l.b16 %v543
        %v682 = vunpack.c.h.b16 %v543
        %v683 = vunpack.c.l.b16 %v544
        %v684 = vunpack.c.h.b16 %v544
        %v685 = vunpack.c.l.b16 %v545
        %v686 = vunpack.c.h.b16 %v545
        %v687 = vunpack.c.l.b16 %v546
        %v688 = vunpack.c.h.b16 %v546
        %v689 = vunpack.c.l.b16 %v547
        %v690 = vunpack.c.h.b16 %v547
        %v691 = vunpack.c.l.b16 %v548
        %v692 = vunpack.c.h.b16 %v548
        %v693 = vunpack.c.l.b16 %v549
        %v694 = vunpack.c.h.b16 %v549
        %v695 = vunpack.c.l.b16 %v550
        %v696 = vunpack.c.h.b16 %v550
        %v697 = vunpack.c.l.b16 %v551
        %v698 = vunpack.c.h.b16 %v551
        %v699 = vunpack.c.l.b16 %v552
        %v700 = vunpack.c.h.b16 %v552
        %v701 = vunpack.c.l.b16 %v553
        %v702 = vunpack.c.h.b16 %v553
        %v703 = vunpack.c.l.b16 %v554
        %v704 = vunpack.c.h.b16 %v554
        %v705 = vunpack.c.l.b16 %v555
        %v706 = vunpack.c.h.b16 %v555
        %v707 = vunpack.c.l.b16 %v556
        %v708 = vunpack.c.h.b16 %v556
        %v709 = vunpack.c.l.b16 %v557
        %v710 = vunpack.c.h.b16 %v557
        %v711 = vunpack.c.l.b16 %v558
        %v712 = vunpack.c.h.b16 %v558
        %v713 = vunpack.c.l.b16 %v559
        %v714 = vunpack.c.h.b16 %v559
        %v715 = vunpack.c.l.b16 %v560
        %v716 = vunpack.c.h.b16 %v560
        %v717 = vunpack.c.l.b16 %v561
        %v718 = vunpack.c.h.b16 %v561
        %v719 = vunpack.c.l.b16 %v562
        %v720 = vunpack.c.h.b16 %v562
        %v721 = vpack.c.b16 %v659, %v657
        %v722 = vpack.c.b16 %v660, %v658
        %v723 = vpack.c.b16 %v663, %v661
        %v724 = vpack.c.b16 %v664, %v662
        %v725 = vpack.c.b16 %v667, %v665
        %v726 = vpack.c.b16 %v668, %v666
        %v727 = vpack.c.b16 %v671, %v669
        %v728 = vpack.c.b16 %v672, %v670
        %v729 = vpack.c.b16 %v675, %v673
        %v730 = vpack.c.b16 %v676, %v674
        %v731 = vpack.c.b16 %v679, %v677
        %v732 = vpack.c.b16 %v680, %v678
        %v733 = vpack.c.b16 %v683, %v681
        %v734 = vpack.c.b16 %v684, %v682
        %v735 = vpack.c.b16 %v687, %v685
        %v736 = vpack.c.b16 %v688, %v686
        %v737 = vpack.c.b16 %v691, %v689
        %v738 = vpack.c.b16 %v692, %v690
        %v739 = vpack.c.b16 %v695, %v693
        %v740 = vpack.c.b16 %v696, %v694
        %v741 = vpack.c.b16 %v699, %v697
        %v742 = vpack.c.b16 %v700, %v698
        %v743 = vpack.c.b16 %v703, %v701
        %v744 = vpack.c.b16 %v704, %v702
        %v745 = vpack.c.b16 %v707, %v705
        %v746 = vpack.c.b16 %v708, %v706
        %v747 = vpack.c.b16 %v711, %v709
        %v748 = vpack.c.b16 %v712, %v710
        %v749 = vpack.c.b16 %v715, %v713
        %v750 = vpack.c.b16 %v716, %v714
        %v751 = vpack.c.b16 %v719, %v717
        %v752 = vpack.c.b16 %v720, %v718
        %785 = vmatprep.subr.bf16.mxu0 %v722
        %786 = vmatpush1.bf16.msra.mxu0 %v721
        %787 = vmatprep.subr.bf16.mxu0 %v724
        %788 = vmatpush1.bf16.msra.mxu0 %v723
        %789 = vmatprep.subr.bf16.mxu0 %v726
        %790 = vmatpush1.bf16.msra.mxu0 %v725
        %791 = vmatprep.subr.bf16.mxu0 %v728
        %792 = vmatpush1.bf16.msra.mxu0 %v727
        %793 = vmatprep.subr.bf16.mxu0 %v730
        %794 = vmatpush1.bf16.msra.mxu0 %v729
        %795 = vmatprep.subr.bf16.mxu0 %v732
        %796 = vmatpush1.bf16.msra.mxu0 %v731
        %797 = vmatprep.subr.bf16.mxu0 %v734
        %798 = vmatpush1.bf16.msra.mxu0 %v733
        %799 = vmatprep.subr.bf16.mxu0 %v736
        %800 = vmatpush1.bf16.msra.mxu0 %v735
        %801 = vmatprep.subr.bf16.mxu0 %v738
        %802 = vmatpush1.bf16.msra.mxu0 %v737
        %803 = vmatprep.subr.bf16.mxu0 %v740
        %804 = vmatpush1.bf16.msra.mxu0 %v739
        %805 = vmatprep.subr.bf16.mxu0 %v742
        %806 = vmatpush1.bf16.msra.mxu0 %v741
        %807 = vmatprep.subr.bf16.mxu0 %v744
        %808 = vmatpush1.bf16.msra.mxu0 %v743
        %809 = vmatprep.subr.bf16.mxu0 %v746
        %810 = vmatpush1.bf16.msra.mxu0 %v745
        %811 = vmatprep.subr.bf16.mxu0 %v748
        %812 = vmatpush1.bf16.msra.mxu0 %v747
        %813 = vmatprep.subr.bf16.mxu0 %v750
        %814 = vmatpush1.bf16.msra.mxu0 %v749
        %815 = vmatprep.subr.bf16.mxu0 %v752
        %816 = vmatpush1.bf16.msra.mxu0 %v751
        %817 = vmatprep.mubr.bf16.mxu0 %v610
        %818 = vmatmul.mubr.bf16.gmra.mrb[0].mxu0 %v609
        %v819 = vpop.f32.mrb[0].mxu0
        %v820 = vadd.f32 0.0, %v819
        %v821 = vpop.f32.mrb[0].mxu0
        %v822 = vadd.f32 0.0, %v821
        %v823 = vpop.f32.mrb[0].mxu0
        %v824 = vadd.f32 0.0, %v823
        %v825 = vpop.f32.mrb[0].mxu0
        %v826 = vadd.f32 0.0, %v825
        %827 = vmatprep.mubr.bf16.mxu0 %v612
        %828 = vmatmul.mubr.bf16.gmra.mrb[0].mxu0 %v611
        %v829 = vpop.f32.mrb[0].mxu0
        %v830 = vadd.f32 0.0, %v829
        %v831 = vpop.f32.mrb[0].mxu0
        %v832 = vadd.f32 0.0, %v831
        %v833 = vpop.f32.mrb[0].mxu0
        %v834 = vadd.f32 0.0, %v833
        %v835 = vpop.f32.mrb[0].mxu0
        %v836 = vadd.f32 0.0, %v835
        %837 = vmatprep.mubr.bf16.mxu0 %v614
        %838 = vmatmul.mubr.bf16.gmra.mrb[0].mxu0 %v613
        %v839 = vpop.f32.mrb[0].mxu0
        %v840 = vadd.f32 0.0, %v839
        %v841 = vpop.f32.mrb[0].mxu0
        %v842 = vadd.f32 0.0, %v841
        %v843 = vpop.f32.mrb[0].mxu0
        %v844 = vadd.f32 0.0, %v843
        %v845 = vpop.f32.mrb[0].mxu0
        %v846 = vadd.f32 0.0, %v845
        %847 = vmatprep.mubr.bf16.mxu0 %v616
        %848 = vmatmul.mubr.bf16.gmra.mrb[0].mxu0 %v615
        %v849 = vpop.f32.mrb[0].mxu0
        %v850 = vadd.f32 0.0, %v849
        %v851 = vpop.f32.mrb[0].mxu0
        %v852 = vadd.f32 0.0, %v851
        %v853 = vpop.f32.mrb[0].mxu0
        %v854 = vadd.f32 0.0, %v853
        %v855 = vpop.f32.mrb[0].mxu0
        %v856 = vadd.f32 0.0, %v855
        %857 = vdwg.mxu0
        %v858 = vpack.c.bf16 %v824, %v820
        %v859 = vpack.c.bf16 %v826, %v822
        %v860 = vpack.c.bf16 %v834, %v830
        %v861 = vpack.c.bf16 %v836, %v832
        %v862 = vpack.c.bf16 %v844, %v840
        %v863 = vpack.c.bf16 %v846, %v842
        %v864 = vpack.c.bf16 %v854, %v850
        %v865 = vpack.c.bf16 %v856, %v852
        %v880 = vunpack.c.l.b16 %v563
        %v881 = vunpack.c.l.b16 %v564
        %v882 = vunpack.c.l.b16 %v565
        %v883 = vunpack.c.l.b16 %v566
        %v884 = vunpack.c.l.b16 %v567
        %v885 = vunpack.c.l.b16 %v568
        %v886 = vunpack.c.l.b16 %v569
        %v887 = vunpack.c.l.b16 %v570
        %v888 = vunpack.c.l.b16 %v571
        %v889 = vunpack.c.l.b16 %v572
        %v890 = vunpack.c.l.b16 %v573
        %v891 = vunpack.c.l.b16 %v574
        %v892 = vunpack.c.l.b16 %v575
        %v893 = vunpack.c.l.b16 %v576
        %v894 = vpack.c.b16 %v881, %v880
        %v895 = vpack.c.b16 %v883, %v882
        %v896 = vpack.c.b16 %v885, %v884
        %v897 = vpack.c.b16 %v887, %v886
        %v898 = vpack.c.b16 %v889, %v888
        %v899 = vpack.c.b16 %v891, %v890
        %v900 = vpack.c.b16 %v893, %v892
        %vm901 = vcmask 523264
        %v903 = vsel %vm901, %v894, 0
        %v906 = vsel %vm901, %v895, 0
        %v909 = vsel %vm901, %v896, 0
        %v912 = vsel %vm901, %v897, 0
        %v915 = vsel %vm901, %v898, 0
        %v918 = vsel %vm901, %v899, 0
        %v921 = vsel %vm901, %v900, 0
        %923 = vmatprep.subr.bf16.mxu0 %v859
        %924 = vmatpush1.bf16.msra.mxu0 %v858
        %925 = vmatprep.subr.bf16.mxu0 %v861
        %926 = vmatpush1.bf16.msra.mxu0 %v860
        %927 = vmatprep.subr.bf16.mxu0 %v863
        %928 = vmatpush1.bf16.msra.mxu0 %v862
        %929 = vmatprep.subr.bf16.mxu0 %v865
        %930 = vmatpush1.bf16.msra.mxu0 %v864
        %931 = vmatprep.subr.bf16.mxu0 0
        %932 = vmatpush1.bf16.msra.mxu0 0
        %933 = vmatprep.subr.bf16.mxu0 0
        %934 = vmatpush1.bf16.msra.mxu0 0
        %935 = vmatprep.subr.bf16.mxu0 0
        %936 = vmatpush1.bf16.msra.mxu0 0
        %937 = vmatprep.subr.bf16.mxu0 0
        %938 = vmatpush1.bf16.msra.mxu0 0
        %939 = vmatprep.subr.bf16.mxu0 0
        %940 = vmatpush1.bf16.msra.mxu0 0
        %941 = vmatprep.subr.bf16.mxu0 0
        %942 = vmatpush1.bf16.msra.mxu0 0
        %943 = vmatprep.subr.bf16.mxu0 0
        %944 = vmatpush1.bf16.msra.mxu0 0
        %945 = vmatprep.subr.bf16.mxu0 0
        %946 = vmatpush1.bf16.msra.mxu0 0
        %947 = vmatprep.subr.bf16.mxu0 0
        %948 = vmatpush1.bf16.msra.mxu0 0
        %949 = vmatprep.subr.bf16.mxu0 0
        %950 = vmatpush1.bf16.msra.mxu0 0
        %951 = vmatprep.subr.bf16.mxu0 0
        %952 = vmatpush1.bf16.msra.mxu0 0
        %953 = vmatprep.subr.bf16.mxu0 0
        %954 = vmatpush1.bf16.msra.mxu0 0
        %955 = vmatprep.mubr.bf16.mxu0 0
        %956 = vmatmul.mubr.bf16.gmra.mrb[0].mxu0 %v903
        %v957 = vpop.f32.mrb[0].mxu0
        %v958 = vadd.f32 0.0, %v957
        %v959 = vpop.f32.mrb[0].mxu0
        %v960 = vadd.f32 0.0, %v959
        %v961 = vpop.f32.mrb[0].mxu0
        %v962 = vadd.f32 0.0, %v961
        %v963 = vpop.f32.mrb[0].mxu0
        %v964 = vadd.f32 0.0, %v963
        %965 = vmatprep.mubr.bf16.mxu0 0
        %966 = vmatmul.mubr.bf16.gmra.mrb[0].mxu0 %v906
        %v967 = vpop.f32.mrb[0].mxu0
        %v968 = vadd.f32 0.0, %v967
        %v969 = vpop.f32.mrb[0].mxu0
        %v970 = vadd.f32 0.0, %v969
        %v971 = vpop.f32.mrb[0].mxu0
        %v972 = vadd.f32 0.0, %v971
        %v973 = vpop.f32.mrb[0].mxu0
        %v974 = vadd.f32 0.0, %v973
        %975 = vmatprep.mubr.bf16.mxu0 0
        %976 = vmatmul.mubr.bf16.gmra.mrb[0].mxu0 %v909
        %v977 = vpop.f32.mrb[0].mxu0
        %v978 = vadd.f32 0.0, %v977
        %v979 = vpop.f32.mrb[0].mxu0
        %v980 = vadd.f32 0.0, %v979
        %v981 = vpop.f32.mrb[0].mxu0
        %v982 = vadd.f32 0.0, %v981
        %v983 = vpop.f32.mrb[0].mxu0
        %v984 = vadd.f32 0.0, %v983
        %985 = vmatprep.mubr.bf16.mxu0 0
        %986 = vmatmul.mubr.bf16.gmra.mrb[0].mxu0 %v912
        %v987 = vpop.f32.mrb[0].mxu0
        %v988 = vadd.f32 0.0, %v987
        %v989 = vpop.f32.mrb[0].mxu0
        %v990 = vadd.f32 0.0, %v989
        %v991 = vpop.f32.mrb[0].mxu0
        %v992 = vadd.f32 0.0, %v991
        %v993 = vpop.f32.mrb[0].mxu0
        %v994 = vadd.f32 0.0, %v993
        %995 = vmatprep.mubr.bf16.mxu0 0
        %996 = vmatmul.mubr.bf16.gmra.mrb[0].mxu0 %v915
        %v997 = vpop.f32.mrb[0].mxu0
        %v998 = vadd.f32 0.0, %v997
        %v999 = vpop.f32.mrb[0].mxu0
        %v1000 = vadd.f32 0.0, %v999
        %v1001 = vpop.f32.mrb[0].mxu0
        %v1002 = vadd.f32 0.0, %v1001
        %v1003 = vpop.f32.mrb[0].mxu0
        %v1004 = vadd.f32 0.0, %v1003
        %1005 = vmatprep.mubr.bf16.mxu0 0
        %1006 = vmatmul.mubr.bf16.gmra.mrb[0].mxu0 %v918
        %v1007 = vpop.f32.mrb[0].mxu0
        %v1008 = vadd.f32 0.0, %v1007
        %v1009 = vpop.f32.mrb[0].mxu0
        %v1010 = vadd.f32 0.0, %v1009
        %v1011 = vpop.f32.mrb[0].mxu0
        %v1012 = vadd.f32 0.0, %v1011
        %v1013 = vpop.f32.mrb[0].mxu0
        %v1014 = vadd.f32 0.0, %v1013
        %1015 = vmatprep.mubr.bf16.mxu0 0
        %1016 = vmatmul.mubr.bf16.gmra.mrb[0].mxu0 %v921
        %v1017 = vpop.f32.mrb[0].mxu0
        %v1018 = vadd.f32 0.0, %v1017
        %v1019 = vpop.f32.mrb[0].mxu0
        %v1020 = vadd.f32 0.0, %v1019
        %v1021 = vpop.f32.mrb[0].mxu0
        %v1022 = vadd.f32 0.0, %v1021
        %v1023 = vpop.f32.mrb[0].mxu0
        %v1024 = vadd.f32 0.0, %v1023
        %1025 = vdwg.mxu0
        %v1026 = vld [vmem:[%s447] sm:$0xff]
        %v1027 = vld [vmem:[%s447 + $0x8] sm:$0xff]
        %v1028 = vld [vmem:[%s447 + $0x10] sm:$0xff]
        %v1029 = vld [vmem:[%s447 + $0x18] sm:$0xff]
        %v1030 = vld [vmem:[%s447 + $0x20] sm:$0xff]
        %v1031 = vld [vmem:[%s447 + $0x28] sm:$0xff]
        %v1032 = vld [vmem:[%s447 + $0x30] sm:$0xff]
        %v1033 = vld [vmem:[%s447 + $0x38] sm:$0xff]
        %v1034 = vld [vmem:[%s447 + $0x40] sm:$0xff]
        %v1035 = vld [vmem:[%s447 + $0x48] sm:$0xff]
        %v1036 = vld [vmem:[%s447 + $0x50] sm:$0xff]
        %v1037 = vld [vmem:[%s447 + $0x58] sm:$0xff]
        %v1038 = vld [vmem:[%s447 + $0x60] sm:$0xff]
        %v1039 = vld [vmem:[%s447 + $0x68] sm:$0xff]
        %v1040 = vld [vmem:[%s447 + $0x70] sm:$0xff]
        %v1041 = vld [vmem:[%s447 + $0x78] sm:$0xff]
        %v1042 = vld [vmem:[%s447 + $0x80] sm:$0xff]
        %v1043 = vld [vmem:[%s447 + $0x88] sm:$0xff]
        %v1044 = vld [vmem:[%s447 + $0x90] sm:$0xff]
        %v1045 = vld [vmem:[%s447 + $0x98] sm:$0xff]
        %v1046 = vld [vmem:[%s447 + $0xa0] sm:$0xff]
        %v1047 = vld [vmem:[%s447 + $0xa8] sm:$0xff]
        %v1048 = vld [vmem:[%s447 + $0xb0] sm:$0xff]
        %v1049 = vld [vmem:[%s447 + $0xb8] sm:$0xff]
        %v1050 = vld [vmem:[%s447 + $0xc0] sm:$0xff]
        %v1051 = vld [vmem:[%s447 + $0xc8] sm:$0xff]
        %v1052 = vld [vmem:[%s447 + $0xd0] sm:$0xff]
        %v1053 = vld [vmem:[%s447 + $0xd8] sm:$0xff]
        %v1054 = vadd.f32 %v1026, %v958
        %v1055 = vadd.f32 %v1027, %v960
        %v1056 = vadd.f32 %v1028, %v962
        %v1057 = vadd.f32 %v1029, %v964
        %v1058 = vadd.f32 %v1030, %v968
        %v1059 = vadd.f32 %v1031, %v970
        %v1060 = vadd.f32 %v1032, %v972
        %v1061 = vadd.f32 %v1033, %v974
        %v1062 = vadd.f32 %v1034, %v978
        %v1063 = vadd.f32 %v1035, %v980
        %v1064 = vadd.f32 %v1036, %v982
        %v1065 = vadd.f32 %v1037, %v984
        %v1066 = vadd.f32 %v1038, %v988
        %v1067 = vadd.f32 %v1039, %v990
        %v1068 = vadd.f32 %v1040, %v992
        %v1069 = vadd.f32 %v1041, %v994
        %v1070 = vadd.f32 %v1042, %v998
        %v1071 = vadd.f32 %v1043, %v1000
        %v1072 = vadd.f32 %v1044, %v1002
        %v1073 = vadd.f32 %v1045, %v1004
        %v1074 = vadd.f32 %v1046, %v1008
        %v1075 = vadd.f32 %v1047, %v1010
        %v1076 = vadd.f32 %v1048, %v1012
        %v1077 = vadd.f32 %v1049, %v1014
        %v1078 = vadd.f32 %v1050, %v1018
        %v1079 = vadd.f32 %v1051, %v1020
        %v1080 = vadd.f32 %v1052, %v1022
        %v1081 = vadd.f32 %v1053, %v1024
        %1082 = vst [vmem:[%s447] sm:$0xff] %v1054
        %1083 = vst [vmem:[%s447 + $0x8] sm:$0xff] %v1055
        %1084 = vst [vmem:[%s447 + $0x10] sm:$0xff] %v1056
        %1085 = vst [vmem:[%s447 + $0x18] sm:$0xff] %v1057
        %1086 = vst [vmem:[%s447 + $0x20] sm:$0xff] %v1058
        %1087 = vst [vmem:[%s447 + $0x28] sm:$0xff] %v1059
        %1088 = vst [vmem:[%s447 + $0x30] sm:$0xff] %v1060
        %1089 = vst [vmem:[%s447 + $0x38] sm:$0xff] %v1061
        %1090 = vst [vmem:[%s447 + $0x40] sm:$0xff] %v1062
        %1091 = vst [vmem:[%s447 + $0x48] sm:$0xff] %v1063
        %1092 = vst [vmem:[%s447 + $0x50] sm:$0xff] %v1064
        %1093 = vst [vmem:[%s447 + $0x58] sm:$0xff] %v1065
        %1094 = vst [vmem:[%s447 + $0x60] sm:$0xff] %v1066
        %1095 = vst [vmem:[%s447 + $0x68] sm:$0xff] %v1067
        %1096 = vst [vmem:[%s447 + $0x70] sm:$0xff] %v1068
        %1097 = vst [vmem:[%s447 + $0x78] sm:$0xff] %v1069
        %1098 = vst [vmem:[%s447 + $0x80] sm:$0xff] %v1070
        %1099 = vst [vmem:[%s447 + $0x88] sm:$0xff] %v1071
        %1100 = vst [vmem:[%s447 + $0x90] sm:$0xff] %v1072
        %1101 = vst [vmem:[%s447 + $0x98] sm:$0xff] %v1073
        %1102 = vst [vmem:[%s447 + $0xa0] sm:$0xff] %v1074
        %1103 = vst [vmem:[%s447 + $0xa8] sm:$0xff] %v1075
        %1104 = vst [vmem:[%s447 + $0xb0] sm:$0xff] %v1076
        %1105 = vst [vmem:[%s447 + $0xb8] sm:$0xff] %v1077
        %1106 = vst [vmem:[%s447 + $0xc0] sm:$0xff] %v1078
        %1107 = vst [vmem:[%s447 + $0xc8] sm:$0xff] %v1079
        %1108 = vst [vmem:[%s447 + $0xd0] sm:$0xff] %v1080
        %1109 = vst [vmem:[%s447 + $0xd8] sm:$0xff] %v1081
        %v1110 = vld [vmem:[%s3 + $0x100] sm:$0xff]
        %v1111 = vld [vmem:[%s3 + $0x108] sm:$0xff]
        %v1112 = vld [vmem:[%s3 + $0x110] sm:$0xff]
        %v1113 = vld [vmem:[%s3 + $0x118] sm:$0xff]
        %v1114 = vld [vmem:[%s3 + $0x120] sm:$0xff]
        %v1115 = vld [vmem:[%s3 + $0x128] sm:$0xff]
        %v1116 = vld [vmem:[%s3 + $0x130] sm:$0xff]
        %v1117 = vld [vmem:[%s3 + $0x138] sm:$0xff]
        %v1118 = vld [vmem:[#allocation5] sm:$0xf]
        %v1119 = vld [vmem:[#allocation5 + $0x4] sm:$0xf]
        %v1120 = vld [vmem:[#allocation5 + $0x8] sm:$0xf]
        %v1121 = vld [vmem:[#allocation5 + $0xc] sm:$0xf]
        %v1122 = vld [vmem:[#allocation5 + $0x10] sm:$0xf]
        %v1123 = vld [vmem:[#allocation5 + $0x14] sm:$0xf]
        %v1124 = vld [vmem:[#allocation5 + $0x18] sm:$0xf]
        %v1125 = vld [vmem:[#allocation5 + $0x1c] sm:$0xf]
        %v1126 = vld [vmem:[#allocation5 + $0x20] sm:$0xf]
        %v1127 = vld [vmem:[#allocation5 + $0x24] sm:$0xf]
        %v1128 = vld [vmem:[#allocation5 + $0x28] sm:$0xf]
        %v1129 = vld [vmem:[#allocation5 + $0x2c] sm:$0xf]
        %v1130 = vld [vmem:[#allocation5 + $0x30] sm:$0xf]
        %v1131 = vld [vmem:[#allocation5 + $0x34] sm:$0xf]
        %v1132 = vld [vmem:[%s452] sm:$0xf]
        %v1133 = vld [vmem:[%s452 + $0x4] sm:$0xf]
        %v1134 = vld [vmem:[%s452 + $0x8] sm:$0xf]
        %v1135 = vld [vmem:[%s452 + $0xc] sm:$0xf]
        %v1136 = vld [vmem:[%s452 + $0x10] sm:$0xf]
        %v1137 = vld [vmem:[%s452 + $0x14] sm:$0xf]
        %v1138 = vld [vmem:[%s452 + $0x18] sm:$0xf]
        %v1139 = vld [vmem:[%s452 + $0x1c] sm:$0xf]
        %v1140 = vld [vmem:[%s452 + $0x20] sm:$0xf]
        %v1141 = vld [vmem:[%s452 + $0x24] sm:$0xf]
        %v1142 = vld [vmem:[%s452 + $0x28] sm:$0xf]
        %v1143 = vld [vmem:[%s452 + $0x2c] sm:$0xf]
        %v1144 = vld [vmem:[%s452 + $0x30] sm:$0xf]
        %v1145 = vld [vmem:[%s452 + $0x34] sm:$0xf]
        %v1146 = vld [vmem:[%s452 + $0x38] sm:$0xf]
        %v1147 = vld [vmem:[%s452 + $0x3c] sm:$0xf]
        %v1162 = vunpack.c.l.b16 %v1118
        %v1163 = vunpack.c.l.b16 %v1119
        %v1164 = vunpack.c.l.b16 %v1120
        %v1165 = vunpack.c.l.b16 %v1121
        %v1166 = vunpack.c.l.b16 %v1122
        %v1167 = vunpack.c.l.b16 %v1123
        %v1168 = vunpack.c.l.b16 %v1124
        %v1169 = vunpack.c.l.b16 %v1125
        %v1170 = vunpack.c.l.b16 %v1126
        %v1171 = vunpack.c.l.b16 %v1127
        %v1172 = vunpack.c.l.b16 %v1128
        %v1173 = vunpack.c.l.b16 %v1129
        %v1174 = vunpack.c.l.b16 %v1130
        %v1175 = vunpack.c.l.b16 %v1131
        %v1176 = vpack.c.b16 %v1163, %v1162
        %v1177 = vpack.c.b16 %v1165, %v1164
        %v1178 = vpack.c.b16 %v1167, %v1166
        %v1179 = vpack.c.b16 %v1169, %v1168
        %v1180 = vpack.c.b16 %v1171, %v1170
        %v1181 = vpack.c.b16 %v1173, %v1172
        %v1182 = vpack.c.b16 %v1175, %v1174
        %v1206 = vunpack.c.l.b16 %v1132
        %v1207 = vunpack.c.l.b16 %v1133
        %v1208 = vunpack.c.l.b16 %v1134
        %v1209 = vunpack.c.l.b16 %v1135
        %v1210 = vunpack.c.l.b16 %v1136
        %v1211 = vunpack.c.l.b16 %v1137
        %v1212 = vunpack.c.l.b16 %v1138
        %v1213 = vunpack.c.l.b16 %v1139
        %v1214 = vunpack.c.l.b16 %v1140
        %v1215 = vunpack.c.l.b16 %v1141
        %v1216 = vunpack.c.l.b16 %v1142
        %v1217 = vunpack.c.l.b16 %v1143
        %v1218 = vunpack.c.l.b16 %v1144
        %v1219 = vunpack.c.l.b16 %v1145
        %v1220 = vunpack.c.l.b16 %v1146
        %v1221 = vunpack.c.l.b16 %v1147
        %v1222 = vpack.c.b16 %v1207, %v1206
        %v1223 = vpack.c.b16 %v1209, %v1208
        %v1224 = vpack.c.b16 %v1211, %v1210
        %v1225 = vpack.c.b16 %v1213, %v1212
        %v1226 = vpack.c.b16 %v1215, %v1214
        %v1227 = vpack.c.b16 %v1217, %v1216
        %v1228 = vpack.c.b16 %v1219, %v1218
        %v1229 = vpack.c.b16 %v1221, %v1220
        %1238 = vmatprep.subr.bf16.mxu0 0
        %1239 = vmatpush1.bf16.msra.mxu0 %v1222
        %1240 = vmatprep.subr.bf16.mxu0 0
        %1241 = vmatpush1.bf16.msra.mxu0 %v1223
        %1242 = vmatprep.subr.bf16.mxu0 0
        %1243 = vmatpush1.bf16.msra.mxu0 %v1224
        %1244 = vmatprep.subr.bf16.mxu0 0
        %1245 = vmatpush1.bf16.msra.mxu0 %v1225
        %1246 = vmatprep.subr.bf16.mxu0 0
        %1247 = vmatpush1.bf16.msra.mxu0 %v1226
        %1248 = vmatprep.subr.bf16.mxu0 0
        %1249 = vmatpush1.bf16.msra.mxu0 %v1227
        %1250 = vmatprep.subr.bf16.mxu0 0
        %1251 = vmatpush1.bf16.msra.mxu0 %v1228
        %1252 = vmatprep.subr.bf16.mxu0 0
        %1253 = vmatpush1.bf16.msra.mxu0 %v1229
        %1254 = vmatprep.subr.bf16.mxu0 0
        %1255 = vmatpush1.bf16.msra.mxu0 0
        %1256 = vmatprep.subr.bf16.mxu0 0
        %1257 = vmatpush1.bf16.msra.mxu0 0
        %1258 = vmatprep.subr.bf16.mxu0 0
        %1259 = vmatpush1.bf16.msra.mxu0 0
        %1260 = vmatprep.subr.bf16.mxu0 0
        %1261 = vmatpush1.bf16.msra.mxu0 0
        %1262 = vmatprep.subr.bf16.mxu0 0
        %1263 = vmatpush1.bf16.msra.mxu0 0
        %1264 = vmatprep.subr.bf16.mxu0 0
        %1265 = vmatpush1.bf16.msra.mxu0 0
        %1266 = vmatprep.subr.bf16.mxu0 0
        %1267 = vmatpush1.bf16.msra.mxu0 0
        %1268 = vmatprep.subr.bf16.mxu0 0
        %1269 = vmatpush1.bf16.msra.mxu0 0
        %1270 = vmatprep.mubr.bf16.mxu0 0
        %1271 = vmatmul.mubr.bf16.gmra.mrb[0].mxu0 %v1176
        %v1272 = vpop.f32.mrb[0].mxu0
        %v1273 = vadd.f32 0.0, %v1272
        %v1274 = vpop.f32.mrb[0].mxu0
        %v1275 = vpop.f32.mrb[0].mxu0
        %v1276 = vadd.f32 0.0, %v1275
        %v1277 = vpop.f32.mrb[0].mxu0
        %1278 = vmatprep.mubr.bf16.mxu0 0
        %1279 = vmatmul.mubr.bf16.gmra.mrb[0].mxu0 %v1177
        %v1280 = vpop.f32.mrb[0].mxu0
        %v1281 = vadd.f32 0.0, %v1280
        %v1282 = vpop.f32.mrb[0].mxu0
        %v1283 = vpop.f32.mrb[0].mxu0
        %v1284 = vadd.f32 0.0, %v1283
        %v1285 = vpop.f32.mrb[0].mxu0
        %1286 = vmatprep.mubr.bf16.mxu0 0
        %1287 = vmatmul.mubr.bf16.gmra.mrb[0].mxu0 %v1178
        %v1288 = vpop.f32.mrb[0].mxu0
        %v1289 = vadd.f32 0.0, %v1288
        %v1290 = vpop.f32.mrb[0].mxu0
        %v1291 = vpop.f32.mrb[0].mxu0
        %v1292 = vadd.f32 0.0, %v1291
        %v1293 = vpop.f32.mrb[0].mxu0
        %1294 = vmatprep.mubr.bf16.mxu0 0
        %1295 = vmatmul.mubr.bf16.gmra.mrb[0].mxu0 %v1179
        %v1296 = vpop.f32.mrb[0].mxu0
        %v1297 = vadd.f32 0.0, %v1296
        %v1298 = vpop.f32.mrb[0].mxu0
        %v1299 = vpop.f32.mrb[0].mxu0
        %v1300 = vadd.f32 0.0, %v1299
        %v1301 = vpop.f32.mrb[0].mxu0
        %1302 = vmatprep.mubr.bf16.mxu0 0
        %1303 = vmatmul.mubr.bf16.gmra.mrb[0].mxu0 %v1180
        %v1304 = vpop.f32.mrb[0].mxu0
        %v1305 = vadd.f32 0.0, %v1304
        %v1306 = vpop.f32.mrb[0].mxu0
        %v1307 = vpop.f32.mrb[0].mxu0
        %v1308 = vadd.f32 0.0, %v1307
        %v1309 = vpop.f32.mrb[0].mxu0
        %1310 = vmatprep.mubr.bf16.mxu0 0
        %1311 = vmatmul.mubr.bf16.gmra.mrb[0].mxu0 %v1181
        %v1312 = vpop.f32.mrb[0].mxu0
        %v1313 = vadd.f32 0.0, %v1312
        %v1314 = vpop.f32.mrb[0].mxu0
        %v1315 = vpop.f32.mrb[0].mxu0
        %v1316 = vadd.f32 0.0, %v1315
        %v1317 = vpop.f32.mrb[0].mxu0
        %1318 = vmatprep.mubr.bf16.mxu0 0
        %1319 = vmatmul.mubr.bf16.gmra.mrb[0].mxu0 %v1182
        %v1320 = vpop.f32.mrb[0].mxu0
        %v1321 = vadd.f32 0.0, %v1320
        %v1322 = vpop.f32.mrb[0].mxu0
        %v1323 = vpop.f32.mrb[0].mxu0
        %v1324 = vadd.f32 0.0, %v1323
        %v1325 = vpop.f32.mrb[0].mxu0
        %1326 = vdwg.mxu0
        %v1327 = vpack.c.bf16 %v1276, %v1273
        %v1328 = vpack.c.bf16 %v1284, %v1281
        %v1329 = vpack.c.bf16 %v1292, %v1289
        %v1330 = vpack.c.bf16 %v1300, %v1297
        %v1331 = vpack.c.bf16 %v1308, %v1305
        %v1332 = vpack.c.bf16 %v1316, %v1313
        %v1333 = vpack.c.bf16 %v1324, %v1321
        %v1342 = vunpack.c.l.b16 %v1110
        %v1343 = vunpack.c.h.b16 %v1110
        %v1344 = vunpack.c.l.b16 %v1111
        %v1345 = vunpack.c.h.b16 %v1111
        %v1346 = vunpack.c.l.b16 %v1112
        %v1347 = vunpack.c.h.b16 %v1112
        %v1348 = vunpack.c.l.b16 %v1113
        %v1349 = vunpack.c.h.b16 %v1113
        %v1350 = vunpack.c.l.b16 %v1114
        %v1351 = vunpack.c.h.b16 %v1114
        %v1352 = vunpack.c.l.b16 %v1115
        %v1353 = vunpack.c.h.b16 %v1115
        %v1354 = vunpack.c.l.b16 %v1116
        %v1355 = vunpack.c.h.b16 %v1116
        %v1356 = vunpack.c.l.b16 %v1117
        %v1357 = vunpack.c.h.b16 %v1117
        %v1358 = vpack.c.b16 %v1344, %v1342
        %v1359 = vpack.c.b16 %v1345, %v1343
        %v1360 = vpack.c.b16 %v1348, %v1346
        %v1361 = vpack.c.b16 %v1349, %v1347
        %v1362 = vpack.c.b16 %v1352, %v1350
        %v1363 = vpack.c.b16 %v1353, %v1351
        %v1364 = vpack.c.b16 %v1356, %v1354
        %v1365 = vpack.c.b16 %v1357, %v1355
        %v1375 = vsel %vm901, %v1327, 0
        %v1378 = vsel %vm901, %v1328, 0
        %v1381 = vsel %vm901, %v1329, 0
        %v1384 = vsel %vm901, %v1330, 0
        %v1387 = vsel %vm901, %v1331, 0
        %v1390 = vsel %vm901, %v1332, 0
        %v1393 = vsel %vm901, %v1333, 0
        %1395 = vmatprep.subr.bf16.mxu0 %v1359
        %1396 = vmatpush1.bf16.msra.mxu0 %v1358
        %1397 = vmatprep.subr.bf16.mxu0 %v1361
        %1398 = vmatpush1.bf16.msra.mxu0 %v1360
        %1399 = vmatprep.subr.bf16.mxu0 %v1363
        %1400 = vmatpush1.bf16.msra.mxu0 %v1362
        %1401 = vmatprep.subr.bf16.mxu0 %v1365
        %1402 = vmatpush1.bf16.msra.mxu0 %v1364
        %1403 = vmatprep.subr.bf16.mxu0 0
        %1404 = vmatpush1.bf16.msra.mxu0 0
        %1405 = vmatprep.subr.bf16.mxu0 0
        %1406 = vmatpush1.bf16.msra.mxu0 0
        %1407 = vmatprep.subr.bf16.mxu0 0
        %1408 = vmatpush1.bf16.msra.mxu0 0
        %1409 = vmatprep.subr.bf16.mxu0 0
        %1410 = vmatpush1.bf16.msra.mxu0 0
        %1411 = vmatprep.subr.bf16.mxu0 0
        %1412 = vmatpush1.bf16.msra.mxu0 0
        %1413 = vmatprep.subr.bf16.mxu0 0
        %1414 = vmatpush1.bf16.msra.mxu0 0
        %1415 = vmatprep.subr.bf16.mxu0 0
        %1416 = vmatpush1.bf16.msra.mxu0 0
        %1417 = vmatprep.subr.bf16.mxu0 0
        %1418 = vmatpush1.bf16.msra.mxu0 0
        %1419 = vmatprep.subr.bf16.mxu0 0
        %1420 = vmatpush1.bf16.msra.mxu0 0
        %1421 = vmatprep.subr.bf16.mxu0 0
        %1422 = vmatpush1.bf16.msra.mxu0 0
        %1423 = vmatprep.subr.bf16.mxu0 0
        %1424 = vmatpush1.bf16.msra.mxu0 0
        %1425 = vmatprep.subr.bf16.mxu0 0
        %1426 = vmatpush1.bf16.msra.mxu0 0
        %1427 = vmatprep.mubr.bf16.mxu0 0
        %1428 = vmatmul.mubr.bf16.gmra.mrb[0].mxu0 %v1375
        %v1429 = vpop.f32.mrb[0].mxu0
        %v1430 = vadd.f32 0.0, %v1429
        %v1431 = vpop.f32.mrb[0].mxu0
        %v1432 = vadd.f32 0.0, %v1431
        %v1433 = vpop.f32.mrb[0].mxu0
        %v1434 = vadd.f32 0.0, %v1433
        %v1435 = vpop.f32.mrb[0].mxu0
        %v1436 = vadd.f32 0.0, %v1435
        %1437 = vmatprep.mubr.bf16.mxu0 0
        %1438 = vmatmul.mubr.bf16.gmra.mrb[0].mxu0 %v1378
        %v1439 = vpop.f32.mrb[0].mxu0
        %v1440 = vadd.f32 0.0, %v1439
        %v1441 = vpop.f32.mrb[0].mxu0
        %v1442 = vadd.f32 0.0, %v1441
        %v1443 = vpop.f32.mrb[0].mxu0
        %v1444 = vadd.f32 0.0, %v1443
        %v1445 = vpop.f32.mrb[0].mxu0
        %v1446 = vadd.f32 0.0, %v1445
        %1447 = vmatprep.mubr.bf16.mxu0 0
        %1448 = vmatmul.mubr.bf16.gmra.mrb[0].mxu0 %v1381
        %v1449 = vpop.f32.mrb[0].mxu0
        %v1450 = vadd.f32 0.0, %v1449
        %v1451 = vpop.f32.mrb[0].mxu0
        %v1452 = vadd.f32 0.0, %v1451
        %v1453 = vpop.f32.mrb[0].mxu0
        %v1454 = vadd.f32 0.0, %v1453
        %v1455 = vpop.f32.mrb[0].mxu0
        %v1456 = vadd.f32 0.0, %v1455
        %1457 = vmatprep.mubr.bf16.mxu0 0
        %1458 = vmatmul.mubr.bf16.gmra.mrb[0].mxu0 %v1384
        %v1459 = vpop.f32.mrb[0].mxu0
        %v1460 = vadd.f32 0.0, %v1459
        %v1461 = vpop.f32.mrb[0].mxu0
        %v1462 = vadd.f32 0.0, %v1461
        %v1463 = vpop.f32.mrb[0].mxu0
        %v1464 = vadd.f32 0.0, %v1463
        %v1465 = vpop.f32.mrb[0].mxu0
        %v1466 = vadd.f32 0.0, %v1465
        %1467 = vmatprep.mubr.bf16.mxu0 0
        %1468 = vmatmul.mubr.bf16.gmra.mrb[0].mxu0 %v1387
        %v1469 = vpop.f32.mrb[0].mxu0
        %v1470 = vadd.f32 0.0, %v1469
        %v1471 = vpop.f32.mrb[0].mxu0
        %v1472 = vadd.f32 0.0, %v1471
        %v1473 = vpop.f32.mrb[0].mxu0
        %v1474 = vadd.f32 0.0, %v1473
        %v1475 = vpop.f32.mrb[0].mxu0
        %v1476 = vadd.f32 0.0, %v1475
        %1477 = vmatprep.mubr.bf16.mxu0 0
        %1478 = vmatmul.mubr.bf16.gmra.mrb[0].mxu0 %v1390
        %v1479 = vpop.f32.mrb[0].mxu0
        %v1480 = vadd.f32 0.0, %v1479
        %v1481 = vpop.f32.mrb[0].mxu0
        %v1482 = vadd.f32 0.0, %v1481
        %v1483 = vpop.f32.mrb[0].mxu0
        %v1484 = vadd.f32 0.0, %v1483
        %v1485 = vpop.f32.mrb[0].mxu0
        %v1486 = vadd.f32 0.0, %v1485
        %1487 = vmatprep.mubr.bf16.mxu0 0
        %1488 = vmatmul.mubr.bf16.gmra.mrb[0].mxu0 %v1393
        %v1489 = vpop.f32.mrb[0].mxu0
        %v1490 = vadd.f32 0.0, %v1489
        %v1491 = vpop.f32.mrb[0].mxu0
        %v1492 = vadd.f32 0.0, %v1491
        %v1493 = vpop.f32.mrb[0].mxu0
        %v1494 = vadd.f32 0.0, %v1493
        %v1495 = vpop.f32.mrb[0].mxu0
        %v1496 = vadd.f32 0.0, %v1495
        %1497 = vdwg.mxu0
        %v1498 = vld [vmem:[%s447] sm:$0xff]
        %v1499 = vld [vmem:[%s447 + $0x8] sm:$0xff]
        %v1500 = vld [vmem:[%s447 + $0x10] sm:$0xff]
        %v1501 = vld [vmem:[%s447 + $0x18] sm:$0xff]
        %v1502 = vld [vmem:[%s447 + $0x20] sm:$0xff]
        %v1503 = vld [vmem:[%s447 + $0x28] sm:$0xff]
        %v1504 = vld [vmem:[%s447 + $0x30] sm:$0xff]
        %v1505 = vld [vmem:[%s447 + $0x38] sm:$0xff]
        %v1506 = vld [vmem:[%s447 + $0x40] sm:$0xff]
        %v1507 = vld [vmem:[%s447 + $0x48] sm:$0xff]
        %v1508 = vld [vmem:[%s447 + $0x50] sm:$0xff]
        %v1509 = vld [vmem:[%s447 + $0x58] sm:$0xff]
        %v1510 = vld [vmem:[%s447 + $0x60] sm:$0xff]
        %v1511 = vld [vmem:[%s447 + $0x68] sm:$0xff]
        %v1512 = vld [vmem:[%s447 + $0x70] sm:$0xff]
        %v1513 = vld [vmem:[%s447 + $0x78] sm:$0xff]
        %v1514 = vld [vmem:[%s447 + $0x80] sm:$0xff]
        %v1515 = vld [vmem:[%s447 + $0x88] sm:$0xff]
        %v1516 = vld [vmem:[%s447 + $0x90] sm:$0xff]
        %v1517 = vld [vmem:[%s447 + $0x98] sm:$0xff]
        %v1518 = vld [vmem:[%s447 + $0xa0] sm:$0xff]
        %v1519 = vld [vmem:[%s447 + $0xa8] sm:$0xff]
        %v1520 = vld [vmem:[%s447 + $0xb0] sm:$0xff]
        %v1521 = vld [vmem:[%s447 + $0xb8] sm:$0xff]
        %v1522 = vld [vmem:[%s447 + $0xc0] sm:$0xff]
        %v1523 = vld [vmem:[%s447 + $0xc8] sm:$0xff]
        %v1524 = vld [vmem:[%s447 + $0xd0] sm:$0xff]
        %v1525 = vld [vmem:[%s447 + $0xd8] sm:$0xff]
        %v1526 = vadd.f32 %v1498, %v1430
        %v1527 = vadd.f32 %v1499, %v1432
        %v1528 = vadd.f32 %v1500, %v1434
        %v1529 = vadd.f32 %v1501, %v1436
        %v1530 = vadd.f32 %v1502, %v1440
        %v1531 = vadd.f32 %v1503, %v1442
        %v1532 = vadd.f32 %v1504, %v1444
        %v1533 = vadd.f32 %v1505, %v1446
        %v1534 = vadd.f32 %v1506, %v1450
        %v1535 = vadd.f32 %v1507, %v1452
        %v1536 = vadd.f32 %v1508, %v1454
        %v1537 = vadd.f32 %v1509, %v1456
        %v1538 = vadd.f32 %v1510, %v1460
        %v1539 = vadd.f32 %v1511, %v1462
        %v1540 = vadd.f32 %v1512, %v1464
        %v1541 = vadd.f32 %v1513, %v1466
        %v1542 = vadd.f32 %v1514, %v1470
        %v1543 = vadd.f32 %v1515, %v1472
        %v1544 = vadd.f32 %v1516, %v1474
        %v1545 = vadd.f32 %v1517, %v1476
        %v1546 = vadd.f32 %v1518, %v1480
        %v1547 = vadd.f32 %v1519, %v1482
        %v1548 = vadd.f32 %v1520, %v1484
        %v1549 = vadd.f32 %v1521, %v1486
        %v1550 = vadd.f32 %v1522, %v1490
        %v1551 = vadd.f32 %v1523, %v1492
        %v1552 = vadd.f32 %v1524, %v1494
        %v1553 = vadd.f32 %v1525, %v1496
        %1554 = vst [vmem:[%s447] sm:$0xff] %v1526
        %1555 = vst [vmem:[%s447 + $0x8] sm:$0xff] %v1527
        %1556 = vst [vmem:[%s447 + $0x10] sm:$0xff] %v1528
        %1557 = vst [vmem:[%s447 + $0x18] sm:$0xff] %v1529
        %1558 = vst [vmem:[%s447 + $0x20] sm:$0xff] %v1530
        %1559 = vst [vmem:[%s447 + $0x28] sm:$0xff] %v1531
        %1560 = vst [vmem:[%s447 + $0x30] sm:$0xff] %v1532
        %1561 = vst [vmem:[%s447 + $0x38] sm:$0xff] %v1533
        %1562 = vst [vmem:[%s447 + $0x40] sm:$0xff] %v1534
        %1563 = vst [vmem:[%s447 + $0x48] sm:$0xff] %v1535
        %1564 = vst [vmem:[%s447 + $0x50] sm:$0xff] %v1536
        %1565 = vst [vmem:[%s447 + $0x58] sm:$0xff] %v1537
        %1566 = vst [vmem:[%s447 + $0x60] sm:$0xff] %v1538
        %1567 = vst [vmem:[%s447 + $0x68] sm:$0xff] %v1539
        %1568 = vst [vmem:[%s447 + $0x70] sm:$0xff] %v1540
        %1569 = vst [vmem:[%s447 + $0x78] sm:$0xff] %v1541
        %1570 = vst [vmem:[%s447 + $0x80] sm:$0xff] %v1542
        %1571 = vst [vmem:[%s447 + $0x88] sm:$0xff] %v1543
        %1572 = vst [vmem:[%s447 + $0x90] sm:$0xff] %v1544
        %1573 = vst [vmem:[%s447 + $0x98] sm:$0xff] %v1545
        %1574 = vst [vmem:[%s447 + $0xa0] sm:$0xff] %v1546
        %1575 = vst [vmem:[%s447 + $0xa8] sm:$0xff] %v1547
        %1576 = vst [vmem:[%s447 + $0xb0] sm:$0xff] %v1548
        %1577 = vst [vmem:[%s447 + $0xb8] sm:$0xff] %v1549
        %1578 = vst [vmem:[%s447 + $0xc0] sm:$0xff] %v1550
        %1579 = vst [vmem:[%s447 + $0xc8] sm:$0xff] %v1551
        %1580 = vst [vmem:[%s447 + $0xd0] sm:$0xff] %v1552
        %1581 = vst [vmem:[%s447 + $0xd8] sm:$0xff] %v1553
        %v1582 = vld [vmem:[%s3 + $0x140] sm:$0xff]
        %v1583 = vld [vmem:[%s3 + $0x148] sm:$0xff]
        %v1584 = vld [vmem:[#allocation7] sm:$0xff]
        %v1585 = vld [vmem:[#allocation7 + $0x8] sm:$0xff]
        %v1586 = vld [vmem:[#allocation7 + $0x10] sm:$0xff]
        %v1587 = vld [vmem:[#allocation7 + $0x18] sm:$0xff]
        %v1588 = vld [vmem:[#allocation7 + $0x20] sm:$0xff]
        %v1589 = vld [vmem:[#allocation7 + $0x28] sm:$0xff]
        %v1590 = vld [vmem:[#allocation7 + $0x30] sm:$0xff]
        %v1591 = vld [vmem:[#allocation7 + $0x38] sm:$0xff]
        %v1592 = vld [vmem:[#allocation7 + $0x40] sm:$0xff]
        %v1593 = vld [vmem:[#allocation7 + $0x48] sm:$0xff]
        %v1594 = vld [vmem:[#allocation7 + $0x50] sm:$0xff]
        %v1595 = vld [vmem:[#allocation7 + $0x58] sm:$0xff]
        %v1596 = vld [vmem:[#allocation7 + $0x60] sm:$0xff]
        %v1597 = vld [vmem:[#allocation7 + $0x68] sm:$0xff]
        %v1598 = vld [vmem:[%s457] sm:$0xf]
        %v1599 = vld [vmem:[%s457 + $0x4] sm:$0xf]
        %v1600 = vld [vmem:[%s457 + $0x8] sm:$0xf]
        %v1601 = vld [vmem:[%s457 + $0xc] sm:$0xf]
        %v1602 = vld [vmem:[%s457 + $0x10] sm:$0xf]
        %v1603 = vld [vmem:[%s457 + $0x14] sm:$0xf]
        %v1604 = vld [vmem:[%s457 + $0x18] sm:$0xf]
        %v1605 = vld [vmem:[%s457 + $0x1c] sm:$0xf]
        %v1606 = vld [vmem:[%s457 + $0x20] sm:$0xf]
        %v1607 = vld [vmem:[%s457 + $0x24] sm:$0xf]
        %v1608 = vld [vmem:[%s457 + $0x28] sm:$0xf]
        %v1609 = vld [vmem:[%s457 + $0x2c] sm:$0xf]
        %v1610 = vld [vmem:[%s457 + $0x30] sm:$0xf]
        %v1611 = vld [vmem:[%s457 + $0x34] sm:$0xf]
        %v1612 = vld [vmem:[%s457 + $0x38] sm:$0xf]
        %v1613 = vld [vmem:[%s457 + $0x3c] sm:$0xf]
        %v1614 = vld [vmem:[%s457 + $0x40] sm:$0xf]
        %v1615 = vld [vmem:[%s457 + $0x44] sm:$0xf]
        %v1616 = vld [vmem:[%s457 + $0x48] sm:$0xf]
        %v1617 = vld [vmem:[%s457 + $0x4c] sm:$0xf]
        %v1618 = vld [vmem:[%s457 + $0x50] sm:$0xf]
        %v1619 = vld [vmem:[%s457 + $0x54] sm:$0xf]
        %v1620 = vld [vmem:[%s457 + $0x58] sm:$0xf]
        %v1621 = vld [vmem:[%s457 + $0x5c] sm:$0xf]
        %v1622 = vld [vmem:[%s457 + $0x60] sm:$0xf]
        %v1623 = vld [vmem:[%s457 + $0x64] sm:$0xf]
        %v1624 = vld [vmem:[%s457 + $0x68] sm:$0xf]
        %v1625 = vld [vmem:[%s457 + $0x6c] sm:$0xf]
        %v1626 = vld [vmem:[%s457 + $0x70] sm:$0xf]
        %v1627 = vld [vmem:[%s457 + $0x74] sm:$0xf]
        %v1628 = vld [vmem:[%s457 + $0x78] sm:$0xf]
        %v1629 = vld [vmem:[%s457 + $0x7c] sm:$0xf]
        %v1644 = vunpack.c.l.b16 %v1584
        %v1645 = vunpack.c.h.b16 %v1584
        %v1646 = vunpack.c.l.b16 %v1585
        %v1647 = vunpack.c.h.b16 %v1585
        %v1648 = vunpack.c.l.b16 %v1586
        %v1649 = vunpack.c.h.b16 %v1586
        %v1650 = vunpack.c.l.b16 %v1587
        %v1651 = vunpack.c.h.b16 %v1587
        %v1652 = vunpack.c.l.b16 %v1588
        %v1653 = vunpack.c.h.b16 %v1588
        %v1654 = vunpack.c.l.b16 %v1589
        %v1655 = vunpack.c.h.b16 %v1589
        %v1656 = vunpack.c.l.b16 %v1590
        %v1657 = vunpack.c.h.b16 %v1590
        %v1658 = vunpack.c.l.b16 %v1591
        %v1659 = vunpack.c.h.b16 %v1591
        %v1660 = vunpack.c.l.b16 %v1592
        %v1661 = vunpack.c.h.b16 %v1592
        %v1662 = vunpack.c.l.b16 %v1593
        %v1663 = vunpack.c.h.b16 %v1593
        %v1664 = vunpack.c.l.b16 %v1594
        %v1665 = vunpack.c.h.b16 %v1594
        %v1666 = vunpack.c.l.b16 %v1595
        %v1667 = vunpack.c.h.b16 %v1595
        %v1668 = vunpack.c.l.b16 %v1596
        %v1669 = vunpack.c.h.b16 %v1596
        %v1670 = vunpack.c.l.b16 %v1597
        %v1671 = vunpack.c.h.b16 %v1597
        %v1672 = vpack.c.b16 %v1646, %v1644
        %v1673 = vpack.c.b16 %v1647, %v1645
        %v1674 = vpack.c.b16 %v1650, %v1648
        %v1675 = vpack.c.b16 %v1651, %v1649
        %v1676 = vpack.c.b16 %v1654, %v1652
        %v1677 = vpack.c.b16 %v1655, %v1653
        %v1678 = vpack.c.b16 %v1658, %v1656
        %v1679 = vpack.c.b16 %v1659, %v1657
        %v1680 = vpack.c.b16 %v1662, %v1660
        %v1681 = vpack.c.b16 %v1663, %v1661
        %v1682 = vpack.c.b16 %v1666, %v1664
        %v1683 = vpack.c.b16 %v1667, %v1665
        %v1684 = vpack.c.b16 %v1670, %v1668
        %v1685 = vpack.c.b16 %v1671, %v1669
        %v1732 = vunpack.c.l.b16 %v1598
        %v1733 = vunpack.c.l.b16 %v1599
        %v1734 = vunpack.c.l.b16 %v1600
        %v1735 = vunpack.c.l.b16 %v1601
        %v1736 = vunpack.c.l.b16 %v1602
        %v1737 = vunpack.c.l.b16 %v1603
        %v1738 = vunpack.c.l.b16 %v1604
        %v1739 = vunpack.c.l.b16 %v1605
        %v1740 = vunpack.c.l.b16 %v1606
        %v1741 = vunpack.c.l.b16 %v1607
        %v1742 = vunpack.c.l.b16 %v1608
        %v1743 = vunpack.c.l.b16 %v1609
        %v1744 = vunpack.c.l.b16 %v1610
        %v1745 = vunpack.c.l.b16 %v1611
        %v1746 = vunpack.c.l.b16 %v1612
        %v1747 = vunpack.c.l.b16 %v1613
        %v1748 = vunpack.c.l.b16 %v1614
        %v1749 = vunpack.c.l.b16 %v1615
        %v1750 = vunpack.c.l.b16 %v1616
        %v1751 = vunpack.c.l.b16 %v1617
        %v1752 = vunpack.c.l.b16 %v1618
        %v1753 = vunpack.c.l.b16 %v1619
        %v1754 = vunpack.c.l.b16 %v1620
        %v1755 = vunpack.c.l.b16 %v1621
        %v1756 = vunpack.c.l.b16 %v1622
        %v1757 = vunpack.c.l.b16 %v1623
        %v1758 = vunpack.c.l.b16 %v1624
        %v1759 = vunpack.c.l.b16 %v1625
        %v1760 = vunpack.c.l.b16 %v1626
        %v1761 = vunpack.c.l.b16 %v1627
        %v1762 = vunpack.c.l.b16 %v1628
        %v1763 = vunpack.c.l.b16 %v1629
        %v1764 = vpack.c.b16 %v1733, %v1732
        %v1765 = vpack.c.b16 %v1735, %v1734
        %v1766 = vpack.c.b16 %v1737, %v1736
        %v1767 = vpack.c.b16 %v1739, %v1738
        %v1768 = vpack.c.b16 %v1741, %v1740
        %v1769 = vpack.c.b16 %v1743, %v1742
        %v1770 = vpack.c.b16 %v1745, %v1744
        %v1771 = vpack.c.b16 %v1747, %v1746
        %v1772 = vpack.c.b16 %v1749, %v1748
        %v1773 = vpack.c.b16 %v1751, %v1750
        %v1774 = vpack.c.b16 %v1753, %v1752
        %v1775 = vpack.c.b16 %v1755, %v1754
        %v1776 = vpack.c.b16 %v1757, %v1756
        %v1777 = vpack.c.b16 %v1759, %v1758
        %v1778 = vpack.c.b16 %v1761, %v1760
        %v1779 = vpack.c.b16 %v1763, %v1762
        %1796 = vmatprep.subr.bf16.mxu0 0
        %1797 = vmatpush1.bf16.msra.mxu0 %v1764
        %1798 = vmatprep.subr.bf16.mxu0 0
        %1799 = vmatpush1.bf16.msra.mxu0 %v1765
        %1800 = vmatprep.subr.bf16.mxu0 0
        %1801 = vmatpush1.bf16.msra.mxu0 %v1766
        %1802 = vmatprep.subr.bf16.mxu0 0
        %1803 = vmatpush1.bf16.msra.mxu0 %v1767
        %1804 = vmatprep.subr.bf16.mxu0 0
        %1805 = vmatpush1.bf16.msra.mxu0 %v1768
        %1806 = vmatprep.subr.bf16.mxu0 0
        %1807 = vmatpush1.bf16.msra.mxu0 %v1769
        %1808 = vmatprep.subr.bf16.mxu0 0
        %1809 = vmatpush1.bf16.msra.mxu0 %v1770
        %1810 = vmatprep.subr.bf16.mxu0 0
        %1811 = vmatpush1.bf16.msra.mxu0 %v1771
        %1812 = vmatprep.subr.bf16.mxu0 0
        %1813 = vmatpush1.bf16.msra.mxu0 %v1772
        %1814 = vmatprep.subr.bf16.mxu0 0
        %1815 = vmatpush1.bf16.msra.mxu0 %v1773
        %1816 = vmatprep.subr.bf16.mxu0 0
        %1817 = vmatpush1.bf16.msra.mxu0 %v1774
        %1818 = vmatprep.subr.bf16.mxu0 0
        %1819 = vmatpush1.bf16.msra.mxu0 %v1775
        %1820 = vmatprep.subr.bf16.mxu0 0
        %1821 = vmatpush1.bf16.msra.mxu0 %v1776
        %1822 = vmatprep.subr.bf16.mxu0 0
        %1823 = vmatpush1.bf16.msra.mxu0 %v1777
        %1824 = vmatprep.subr.bf16.mxu0 0
        %1825 = vmatpush1.bf16.msra.mxu0 %v1778
        %1826 = vmatprep.subr.bf16.mxu0 0
        %1827 = vmatpush1.bf16.msra.mxu0 %v1779
        %1828 = vmatprep.mubr.bf16.mxu0 %v1673
        %1829 = vmatmul.mubr.bf16.gmra.mrb[0].mxu0 %v1672
        %v1830 = vpop.f32.mrb[0].mxu0
        %v1831 = vadd.f32 0.0, %v1830
        %v1832 = vpop.f32.mrb[0].mxu0
        %v1833 = vpop.f32.mrb[0].mxu0
        %v1834 = vadd.f32 0.0, %v1833
        %v1835 = vpop.f32.mrb[0].mxu0
        %1836 = vmatprep.mubr.bf16.mxu0 %v1675
        %1837 = vmatmul.mubr.bf16.gmra.mrb[0].mxu0 %v1674
        %v1838 = vpop.f32.mrb[0].mxu0
        %v1839 = vadd.f32 0.0, %v1838
        %v1840 = vpop.f32.mrb[0].mxu0
        %v1841 = vpop.f32.mrb[0].mxu0
        %v1842 = vadd.f32 0.0, %v1841
        %v1843 = vpop.f32.mrb[0].mxu0
        %1844 = vmatprep.mubr.bf16.mxu0 %v1677
        %1845 = vmatmul.mubr.bf16.gmra.mrb[0].mxu0 %v1676
        %v1846 = vpop.f32.mrb[0].mxu0
        %v1847 = vadd.f32 0.0, %v1846
        %v1848 = vpop.f32.mrb[0].mxu0
        %v1849 = vpop.f32.mrb[0].mxu0
        %v1850 = vadd.f32 0.0, %v1849
        %v1851 = vpop.f32.mrb[0].mxu0
        %1852 = vmatprep.mubr.bf16.mxu0 %v1679
        %1853 = vmatmul.mubr.bf16.gmra.mrb[0].mxu0 %v1678
        %v1854 = vpop.f32.mrb[0].mxu0
        %v1855 = vadd.f32 0.0, %v1854
        %v1856 = vpop.f32.mrb[0].mxu0
        %v1857 = vpop.f32.mrb[0].mxu0
        %v1858 = vadd.f32 0.0, %v1857
        %v1859 = vpop.f32.mrb[0].mxu0
        %1860 = vmatprep.mubr.bf16.mxu0 %v1681
        %1861 = vmatmul.mubr.bf16.gmra.mrb[0].mxu0 %v1680
        %v1862 = vpop.f32.mrb[0].mxu0
        %v1863 = vadd.f32 0.0, %v1862
        %v1864 = vpop.f32.mrb[0].mxu0
        %v1865 = vpop.f32.mrb[0].mxu0
        %v1866 = vadd.f32 0.0, %v1865
        %v1867 = vpop.f32.mrb[0].mxu0
        %1868 = vmatprep.mubr.bf16.mxu0 %v1683
        %1869 = vmatmul.mubr.bf16.gmra.mrb[0].mxu0 %v1682
        %v1870 = vpop.f32.mrb[0].mxu0
        %v1871 = vadd.f32 0.0, %v1870
        %v1872 = vpop.f32.mrb[0].mxu0
        %v1873 = vpop.f32.mrb[0].mxu0
        %v1874 = vadd.f32 0.0, %v1873
        %v1875 = vpop.f32.mrb[0].mxu0
        %1876 = vmatprep.mubr.bf16.mxu0 %v1685
        %1877 = vmatmul.mubr.bf16.gmra.mrb[0].mxu0 %v1684
        %v1878 = vpop.f32.mrb[0].mxu0
        %v1879 = vadd.f32 0.0, %v1878
        %v1880 = vpop.f32.mrb[0].mxu0
        %v1881 = vpop.f32.mrb[0].mxu0
        %v1882 = vadd.f32 0.0, %v1881
        %v1883 = vpop.f32.mrb[0].mxu0
        %1884 = vdwg.mxu0
        %v1885 = vpack.c.bf16 %v1834, %v1831
        %v1886 = vpack.c.bf16 %v1842, %v1839
        %v1887 = vpack.c.bf16 %v1850, %v1847
        %v1888 = vpack.c.bf16 %v1858, %v1855
        %v1889 = vpack.c.bf16 %v1866, %v1863
        %v1890 = vpack.c.bf16 %v1874, %v1871
        %v1891 = vpack.c.bf16 %v1882, %v1879
        %v1894 = vunpack.c.l.b16 %v1582
        %v1895 = vunpack.c.h.b16 %v1582
        %v1896 = vunpack.c.l.b16 %v1583
        %v1897 = vunpack.c.h.b16 %v1583
        %v1898 = vpack.c.b16 %v1896, %v1894
        %v1899 = vpack.c.b16 %v1897, %v1895
        %vm1902 = vcmask 130048
        %v1904 = vsel %vm1902, %v1885, 0
        %v1907 = vsel %vm1902, %v1886, 0
        %v1910 = vsel %vm1902, %v1887, 0
        %v1913 = vsel %vm1902, %v1888, 0
        %v1916 = vsel %vm1902, %v1889, 0
        %v1919 = vsel %vm1902, %v1890, 0
        %v1922 = vsel %vm1902, %v1891, 0
        %1924 = vmatprep.subr.bf16.mxu0 %v1899
        %1925 = vmatpush1.bf16.msra.mxu0 %v1898
        %1926 = vmatprep.subr.bf16.mxu0 0
        %1927 = vmatpush1.bf16.msra.mxu0 0
        %1928 = vmatprep.subr.bf16.mxu0 0
        %1929 = vmatpush1.bf16.msra.mxu0 0
        %1930 = vmatprep.subr.bf16.mxu0 0
        %1931 = vmatpush1.bf16.msra.mxu0 0
        %1932 = vmatprep.subr.bf16.mxu0 0
        %1933 = vmatpush1.bf16.msra.mxu0 0
        %1934 = vmatprep.subr.bf16.mxu0 0
        %1935 = vmatpush1.bf16.msra.mxu0 0
        %1936 = vmatprep.subr.bf16.mxu0 0
        %1937 = vmatpush1.bf16.msra.mxu0 0
        %1938 = vmatprep.subr.bf16.mxu0 0
        %1939 = vmatpush1.bf16.msra.mxu0 0
        %1940 = vmatprep.subr.bf16.mxu0 0
        %1941 = vmatpush1.bf16.msra.mxu0 0
        %1942 = vmatprep.subr.bf16.mxu0 0
        %1943 = vmatpush1.bf16.msra.mxu0 0
        %1944 = vmatprep.subr.bf16.mxu0 0
        %1945 = vmatpush1.bf16.msra.mxu0 0
        %1946 = vmatprep.subr.bf16.mxu0 0
        %1947 = vmatpush1.bf16.msra.mxu0 0
        %1948 = vmatprep.subr.bf16.mxu0 0
        %1949 = vmatpush1.bf16.msra.mxu0 0
        %1950 = vmatprep.subr.bf16.mxu0 0
        %1951 = vmatpush1.bf16.msra.mxu0 0
        %1952 = vmatprep.subr.bf16.mxu0 0
        %1953 = vmatpush1.bf16.msra.mxu0 0
        %1954 = vmatprep.subr.bf16.mxu0 0
        %1955 = vmatpush1.bf16.msra.mxu0 0
        %1956 = vmatprep.mubr.bf16.mxu0 0
        %1957 = vmatmul.mubr.bf16.gmra.mrb[0].mxu0 %v1904
        %v1958 = vpop.f32.mrb[0].mxu0
        %v1959 = vadd.f32 0.0, %v1958
        %v1960 = vpop.f32.mrb[0].mxu0
        %v1961 = vadd.f32 0.0, %v1960
        %v1962 = vpop.f32.mrb[0].mxu0
        %v1963 = vadd.f32 0.0, %v1962
        %v1964 = vpop.f32.mrb[0].mxu0
        %v1965 = vadd.f32 0.0, %v1964
        %1966 = vmatprep.mubr.bf16.mxu0 0
        %1967 = vmatmul.mubr.bf16.gmra.mrb[0].mxu0 %v1907
        %v1968 = vpop.f32.mrb[0].mxu0
        %v1969 = vadd.f32 0.0, %v1968
        %v1970 = vpop.f32.mrb[0].mxu0
        %v1971 = vadd.f32 0.0, %v1970
        %v1972 = vpop.f32.mrb[0].mxu0
        %v1973 = vadd.f32 0.0, %v1972
        %v1974 = vpop.f32.mrb[0].mxu0
        %v1975 = vadd.f32 0.0, %v1974
        %1976 = vmatprep.mubr.bf16.mxu0 0
        %1977 = vmatmul.mubr.bf16.gmra.mrb[0].mxu0 %v1910
        %v1978 = vpop.f32.mrb[0].mxu0
        %v1979 = vadd.f32 0.0, %v1978
        %v1980 = vpop.f32.mrb[0].mxu0
        %v1981 = vadd.f32 0.0, %v1980
        %v1982 = vpop.f32.mrb[0].mxu0
        %v1983 = vadd.f32 0.0, %v1982
        %v1984 = vpop.f32.mrb[0].mxu0
        %v1985 = vadd.f32 0.0, %v1984
        %1986 = vmatprep.mubr.bf16.mxu0 0
        %1987 = vmatmul.mubr.bf16.gmra.mrb[0].mxu0 %v1913
        %v1988 = vpop.f32.mrb[0].mxu0
        %v1989 = vadd.f32 0.0, %v1988
        %v1990 = vpop.f32.mrb[0].mxu0
        %v1991 = vadd.f32 0.0, %v1990
        %v1992 = vpop.f32.mrb[0].mxu0
        %v1993 = vadd.f32 0.0, %v1992
        %v1994 = vpop.f32.mrb[0].mxu0
        %v1995 = vadd.f32 0.0, %v1994
        %1996 = vmatprep.mubr.bf16.mxu0 0
        %1997 = vmatmul.mubr.bf16.gmra.mrb[0].mxu0 %v1916
        %v1998 = vpop.f32.mrb[0].mxu0
        %v1999 = vadd.f32 0.0, %v1998
        %v2000 = vpop.f32.mrb[0].mxu0
        %v2001 = vadd.f32 0.0, %v2000
        %v2002 = vpop.f32.mrb[0].mxu0
        %v2003 = vadd.f32 0.0, %v2002
        %v2004 = vpop.f32.mrb[0].mxu0
        %v2005 = vadd.f32 0.0, %v2004
        %2006 = vmatprep.mubr.bf16.mxu0 0
        %2007 = vmatmul.mubr.bf16.gmra.mrb[0].mxu0 %v1919
        %v2008 = vpop.f32.mrb[0].mxu0
        %v2009 = vadd.f32 0.0, %v2008
        %v2010 = vpop.f32.mrb[0].mxu0
        %v2011 = vadd.f32 0.0, %v2010
        %v2012 = vpop.f32.mrb[0].mxu0
        %v2013 = vadd.f32 0.0, %v2012
        %v2014 = vpop.f32.mrb[0].mxu0
        %v2015 = vadd.f32 0.0, %v2014
        %2016 = vmatprep.mubr.bf16.mxu0 0
        %2017 = vmatmul.mubr.bf16.gmra.mrb[0].mxu0 %v1922
        %v2018 = vpop.f32.mrb[0].mxu0
        %v2019 = vadd.f32 0.0, %v2018
        %v2020 = vpop.f32.mrb[0].mxu0
        %v2021 = vadd.f32 0.0, %v2020
        %v2022 = vpop.f32.mrb[0].mxu0
        %v2023 = vadd.f32 0.0, %v2022
        %v2024 = vpop.f32.mrb[0].mxu0
        %v2025 = vadd.f32 0.0, %v2024
        %2026 = vdwg.mxu0
        %v2027 = vld [vmem:[%s447] sm:$0xff]
        %v2028 = vld [vmem:[%s447 + $0x8] sm:$0xff]
        %v2029 = vld [vmem:[%s447 + $0x10] sm:$0xff]
        %v2030 = vld [vmem:[%s447 + $0x18] sm:$0xff]
        %v2031 = vld [vmem:[%s447 + $0x20] sm:$0xff]
        %v2032 = vld [vmem:[%s447 + $0x28] sm:$0xff]
        %v2033 = vld [vmem:[%s447 + $0x30] sm:$0xff]
        %v2034 = vld [vmem:[%s447 + $0x38] sm:$0xff]
        %v2035 = vld [vmem:[%s447 + $0x40] sm:$0xff]
        %v2036 = vld [vmem:[%s447 + $0x48] sm:$0xff]
        %v2037 = vld [vmem:[%s447 + $0x50] sm:$0xff]
        %v2038 = vld [vmem:[%s447 + $0x58] sm:$0xff]
        %v2039 = vld [vmem:[%s447 + $0x60] sm:$0xff]
        %v2040 = vld [vmem:[%s447 + $0x68] sm:$0xff]
        %v2041 = vld [vmem:[%s447 + $0x70] sm:$0xff]
        %v2042 = vld [vmem:[%s447 + $0x78] sm:$0xff]
        %v2043 = vld [vmem:[%s447 + $0x80] sm:$0xff]
        %v2044 = vld [vmem:[%s447 + $0x88] sm:$0xff]
        %v2045 = vld [vmem:[%s447 + $0x90] sm:$0xff]
        %v2046 = vld [vmem:[%s447 + $0x98] sm:$0xff]
        %v2047 = vld [vmem:[%s447 + $0xa0] sm:$0xff]
        %v2048 = vld [vmem:[%s447 + $0xa8] sm:$0xff]
        %v2049 = vld [vmem:[%s447 + $0xb0] sm:$0xff]
        %v2050 = vld [vmem:[%s447 + $0xb8] sm:$0xff]
        %v2051 = vld [vmem:[%s447 + $0xc0] sm:$0xff]
        %v2052 = vld [vmem:[%s447 + $0xc8] sm:$0xff]
        %v2053 = vld [vmem:[%s447 + $0xd0] sm:$0xff]
        %v2054 = vld [vmem:[%s447 + $0xd8] sm:$0xff]
        %v2055 = vadd.f32 %v2027, %v1959
        %v2056 = vadd.f32 %v2028, %v1961
        %v2057 = vadd.f32 %v2029, %v1963
        %v2058 = vadd.f32 %v2030, %v1965
        %v2059 = vadd.f32 %v2031, %v1969
        %v2060 = vadd.f32 %v2032, %v1971
        %v2061 = vadd.f32 %v2033, %v1973
        %v2062 = vadd.f32 %v2034, %v1975
        %v2063 = vadd.f32 %v2035, %v1979
        %v2064 = vadd.f32 %v2036, %v1981
        %v2065 = vadd.f32 %v2037, %v1983
        %v2066 = vadd.f32 %v2038, %v1985
        %v2067 = vadd.f32 %v2039, %v1989
        %v2068 = vadd.f32 %v2040, %v1991
        %v2069 = vadd.f32 %v2041, %v1993
        %v2070 = vadd.f32 %v2042, %v1995
        %v2071 = vadd.f32 %v2043, %v1999
        %v2072 = vadd.f32 %v2044, %v2001
        %v2073 = vadd.f32 %v2045, %v2003
        %v2074 = vadd.f32 %v2046, %v2005
        %v2075 = vadd.f32 %v2047, %v2009
        %v2076 = vadd.f32 %v2048, %v2011
        %v2077 = vadd.f32 %v2049, %v2013
        %v2078 = vadd.f32 %v2050, %v2015
        %v2079 = vadd.f32 %v2051, %v2019
        %v2080 = vadd.f32 %v2052, %v2021
        %v2081 = vadd.f32 %v2053, %v2023
        %v2082 = vadd.f32 %v2054, %v2025
        %2083 = vst [vmem:[%s447] sm:$0xff] %v2055
        %2084 = vst [vmem:[%s447 + $0x8] sm:$0xff] %v2056
        %2085 = vst [vmem:[%s447 + $0x10] sm:$0xff] %v2057
        %2086 = vst [vmem:[%s447 + $0x18] sm:$0xff] %v2058
        %2087 = vst [vmem:[%s447 + $0x20] sm:$0xff] %v2059
        %2088 = vst [vmem:[%s447 + $0x28] sm:$0xff] %v2060
        %2089 = vst [vmem:[%s447 + $0x30] sm:$0xff] %v2061
        %2090 = vst [vmem:[%s447 + $0x38] sm:$0xff] %v2062
        %2091 = vst [vmem:[%s447 + $0x40] sm:$0xff] %v2063
        %2092 = vst [vmem:[%s447 + $0x48] sm:$0xff] %v2064
        %2093 = vst [vmem:[%s447 + $0x50] sm:$0xff] %v2065
        %2094 = vst [vmem:[%s447 + $0x58] sm:$0xff] %v2066
        %2095 = vst [vmem:[%s447 + $0x60] sm:$0xff] %v2067
        %2096 = vst [vmem:[%s447 + $0x68] sm:$0xff] %v2068
        %2097 = vst [vmem:[%s447 + $0x70] sm:$0xff] %v2069
        %2098 = vst [vmem:[%s447 + $0x78] sm:$0xff] %v2070
        %2099 = vst [vmem:[%s447 + $0x80] sm:$0xff] %v2071
        %2100 = vst [vmem:[%s447 + $0x88] sm:$0xff] %v2072
        %2101 = vst [vmem:[%s447 + $0x90] sm:$0xff] %v2073
        %2102 = vst [vmem:[%s447 + $0x98] sm:$0xff] %v2074
        %2103 = vst [vmem:[%s447 + $0xa0] sm:$0xff] %v2075
        %2104 = vst [vmem:[%s447 + $0xa8] sm:$0xff] %v2076
        %2105 = vst [vmem:[%s447 + $0xb0] sm:$0xff] %v2077
        %2106 = vst [vmem:[%s447 + $0xb8] sm:$0xff] %v2078
        %2107 = vst [vmem:[%s447 + $0xc0] sm:$0xff] %v2079
        %2108 = vst [vmem:[%s447 + $0xc8] sm:$0xff] %v2080
        %2109 = vst [vmem:[%s447 + $0xd0] sm:$0xff] %v2081
        %2110 = vst [vmem:[%s447 + $0xd8] sm:$0xff] %v2082
        %s2111 = sand.u32 %s251, 1
        %s2112 = scalar_lea.sflag [#allocation4], %s2111
        %s2113 = sand.u32 %s251, 1
        %s2114 = smul.addr %s2113, 224
        %s2115 = scalar_lea.vmem [#allocation8], %s2114
        // Predicated region
        $region65: #{tpu_custom_call.1} parent=51 // pred_check
          %p2116 = pneg %p261
        $region66: #{tpu_custom_call.1} parent=51 // pred_check_branch
          %2118 = sbr.rel (%p2116) target = $region68
        $region67: #{tpu_custom_call.1} parent=51 // pred_region
          %s2119 = smul.u32 14, %s31
          %s2121 = ssub.s32 3584, 3584
          %2122 = vsyncadd %s2112, %s2121
          %s2123 = smul.addr %s2119, 2
          %s2124 = smul.addr %s30, 28
          %s2125 = sadd.s32 %s2123, %s2124
          %s2126 = smul.addr %s2125, 128
          %s2127 = scalar_lea.hbm %s8, %s2126
          %s2128 = sshll.u32 %s2115, 4
          %s2129 = int_to_ptr.vmem [resolvable:$true] %s2128
          %2134 = dma.vmem_to_hbm [thread:$0]  %s2129, 3584, %s2127, %s2112, 256, 256, 16
        $region68: #{tpu_custom_call.1} parent=51 // pred_fallthru
          _
      $region52: #{tpu_custom_call.1} parent=5 // pred_fallthru
        _
      %p2135 = scmp.le.s32.totalorder 2, %s21
      // Predicated region
      $region69: #{tpu_custom_call.1} parent=5 // pred_check
        %p2136 = pneg %p2135
      $region70: #{tpu_custom_call.1} parent=5 // pred_check_branch
        %2138 = sbr.rel (%p2136) target = $region72
      $region71: #{tpu_custom_call.1} parent=5 // pred_region
        %s2139 = ssub.s32 %s21, 2
        // Predicated region
        $region73: #{tpu_custom_call.1} parent=71 // pred_check
          %p2140 = pneg %p267
        $region74: #{tpu_custom_call.1} parent=71 // pred_check_branch
          %2142 = sbr.rel (%p2140) target = $region76
        $region75: #{tpu_custom_call.1} parent=71 // pred_region
          %s2143 = sand.u32 %s252, 1
          %s2144 = scalar_lea.sflag [#allocation4], %s2143
          %s2145 = sand.u32 %s252, 1
          %s2146 = smul.addr %s2145, 224
          %s2147 = scalar_lea.vmem [#allocation8], %s2146
          %2148 = dma.done %s2144, 3584
        $region76: #{tpu_custom_call.1} parent=71 // pred_fallthru
          _
      $region72: #{tpu_custom_call.1} parent=5 // pred_fallthru
        _
    $region6: #{tpu_custom_call.1} parent=1 // loop_footer
      %s25 = sadd.s32 1, %s21
    $region7: #{tpu_custom_call.1} parent=1 // loop_footer_branch
      %20 = sbr.rel target = $region3
    $region8: #{tpu_custom_call.1} parent=1 // loop_exit
      _
    %2149 = vsyncpa [#allocation3], 1
    %s2150 = scalar_lea.sflag [#allocation3], 1
    %2151 = vsyncpa %s2150, 1
    %2152 = vsyncpa [#allocation6], 1
    %2153 = vsyncpa [#allocation4], 1
    %s2154 = scalar_lea.sflag [#allocation4], 1
    %2155 = vsyncpa %s2154, 1

</llo_original>
